<compile_context>
chip_gen: v7x
topology: tpu7x:2x2x1
jax: 0.10.0
libtpu: 0.0.40
codegen_flags: <defaults>
</compile_context>

<pallas_src>
import jax
import jax.numpy as jnp
from jax.experimental import pallas as pl
from jax.experimental.pallas import tpu as pltpu

# ----- model hyperparameters (synthetic, small) -----
STATE_SPACE = 8
Z_SIZE = 4
ACTION_SPACE = 2
HIDDEN = 256                      # per-branch hidden width
CAT = 3 * HIDDEN                  # 768
IN_PACKED = STATE_SPACE + Z_SIZE + ACTION_SPACE   # 14
BATCH = 8


def qnet_kernel(x_ref, wbr_ref, wfc_ref, vec_ref, out_ref):
    # Packed per-vector parameters (single [4, 768] f32 operand).
    b_branch = vec_ref[0:1, :]        # [1, 768]  = [bs | bz | ba]
    b_fc = vec_ref[1:2, :]            # [1, 768]
    wq_row = vec_ref[2:3, :]          # [1, 768]  = q weight, transposed
    bq = vec_ref[3:4, 0:1]            # [1, 1]    = q bias

    # Fused branch layer:
    #   relu([obs|z|a] @ blockdiag(Ws, Wz, Wa) + [bs|bz|ba])  == cat(hs, hz, ha)
    # One [TB,14]x[14,768] MXU op + one bias/ReLU VPU pass.
    h1 = jnp.dot(x_ref[...], wbr_ref[...], preferred_element_type=jnp.float32)
    h1 = jnp.maximum(h1 + b_branch, 0.0)

    # fc layer: single [TB,768] x [768,768] matmul, bf16 operands, f32 accumulate.
    h2 = jnp.dot(h1.astype(jnp.bfloat16), wfc_ref[...],
                 preferred_element_type=jnp.float32)
    h2 = jnp.maximum(h2 + b_fc, 0.0)

    # q head on VPU/XLU (broadcast multiply + lane reduction) — avoids an MXU
    # round-trip that would only use 1 output column.
    out_ref[...] = jnp.sum(h2 * wq_row, axis=-1, keepdims=True) + bq


def qnet_forward(obs, z, a, packed):
    """packed = (w_branch[14,768] bf16, wfc[768,768] bf16, vec_pack[4,768] f32)."""
    w_branch, wfc, vec_pack = packed
    B = obs.shape[0]

    # Pack the three tiny inputs into one operand (bf16 for the MXU path).
    x = jnp.concatenate([obs, z, a], axis=1).astype(jnp.bfloat16)   # [B, 14]

    tile_b = B if B <= 128 else 128
    assert B % tile_b == 0, "batch must be a multiple of the batch tile"
    grid = (B // tile_b,)

    flops = 2 * B * (IN_PACKED * CAT + CAT * CAT + CAT)
    bytes_accessed = (x.size * 2 + w_branch.size * 2 + wfc.size * 2
                      + vec_pack.size * 4 + B * 4)

    return pl.pallas_call(
        qnet_kernel,
        out_shape=jax.ShapeDtypeStruct((B, 1), jnp.float32),
        grid=grid,
        in_specs=[
            pl.BlockSpec((tile_b, IN_PACKED), lambda i: (i, 0)),   # batch-tiled
            pl.BlockSpec((IN_PACKED, CAT), lambda i: (0, 0)),      # resident
            pl.BlockSpec((CAT, CAT), lambda i: (0, 0)),            # resident
            pl.BlockSpec((4, CAT), lambda i: (0, 0)),              # resident
        ],
        out_specs=pl.BlockSpec((tile_b, 1), lambda i: (i, 0)),
        compiler_params=pltpu.CompilerParams(
            dimension_semantics=("parallel",)),
        cost_estimate=pl.CostEstimate(
            flops=flops, transcendentals=0, bytes_accessed=bytes_accessed),
    )(x, w_branch, wfc, vec_pack)


def init_params(key):
    """Deterministic synthetic f32 parameters (PyTorch Linear-style init)."""
    ks = jax.random.split(key, 10)

    def lin(kw, kb, fan_in, fan_out):
        bound = 1.0 / jnp.sqrt(fan_in)
        w = jax.random.uniform(kw, (fan_in, fan_out), jnp.float32, -bound, bound)
        b = jax.random.uniform(kb, (1, fan_out), jnp.float32, -bound, bound)
        return w, b

    ws, bs = lin(ks[0], ks[1], STATE_SPACE, HIDDEN)
    wz, bz = lin(ks[2], ks[3], Z_SIZE, HIDDEN)
    wa, ba = lin(ks[4], ks[5], ACTION_SPACE, HIDDEN)
    wfc, bfc = lin(ks[6], ks[7], CAT, CAT)
    wq, bq = lin(ks[8], ks[9], CAT, 1)
    return (ws, bs, wz, bz, wa, ba, wfc, bfc, wq, bq)


def pack_params(params):
    """One-time host-side packing into the 3 kernel weight operands."""
    (ws, bs, wz, bz, wa, ba, wfc, bfc, wq, bq) = params

    # Block-diagonal branch weight: cat(hs,hz,ha) == [obs|z|a] @ W_bd + [bs|bz|ba]
    w_branch = jnp.zeros((IN_PACKED, CAT), jnp.float32)
    w_branch = w_branch.at[0:STATE_SPACE, 0:HIDDEN].set(ws)
    w_branch = w_branch.at[STATE_SPACE:STATE_SPACE + Z_SIZE,
                           HIDDEN:2 * HIDDEN].set(wz)
    w_branch = w_branch.at[STATE_SPACE + Z_SIZE:, 2 * HIDDEN:].set(wa)

    b_branch = jnp.concatenate([bs, bz, ba], axis=1)          # [1, 768]

    vec_pack = jnp.zeros((4, CAT), jnp.float32)
    vec_pack = vec_pack.at[0:1, :].set(b_branch)
    vec_pack = vec_pack.at[1:2, :].set(bfc)
    vec_pack = vec_pack.at[2:3, :].set(wq.T)                  # q weight as a row
    vec_pack = vec_pack.at[3, 0].set(bq[0, 0])                # q bias scalar

    return (w_branch.astype(jnp.bfloat16),
            wfc.astype(jnp.bfloat16),
            vec_pack)


def qnet_reference(obs, z, a, params):
    """Pure-JAX f32 reference matching the PyTorch forward semantics exactly."""
    (ws, bs, wz, bz, wa, ba, wfc, bfc, wq, bq) = params
    hs = jax.nn.relu(obs @ ws + bs)
    hz = jax.nn.relu(z @ wz + bz)
    ha = jax.nn.relu(a @ wa + ba)
    x = jnp.concatenate([hs, hz, ha], axis=1)
    h = jax.nn.relu(x @ wfc + bfc)
    return h @ wq + bq


def qnet_reference_bf16(obs, z, a, params):
    """Precision-matched reference (bf16-rounded matmul operands, f32 accum)."""
    (ws, bs, wz, bz, wa, ba, wfc, bfc, wq, bq) = params
    f = lambda t: t.astype(jnp.bfloat16).astype(jnp.float32)
    hs = jax.nn.relu(f(obs) @ f(ws) + bs)
    hz = jax.nn.relu(f(z) @ f(wz) + bz)
    ha = jax.nn.relu(f(a) @ f(wa) + ba)
    x = jnp.concatenate([hs, hz, ha], axis=1)
    h = jax.nn.relu(f(x) @ f(wfc) + bfc)
    return h @ wq + bq


if __name__ == "__main__":
    key = jax.random.PRNGKey(0)
    kp, ko, kz, ka = jax.random.split(key, 4)

    params = init_params(kp)
    packed = pack_params(params)

    obs = jax.random.normal(ko, (BATCH, STATE_SPACE), jnp.float32)
    z = jax.random.normal(kz, (BATCH, Z_SIZE), jnp.float32)
    a = jax.random.normal(ka, (BATCH, ACTION_SPACE), jnp.float32)

    q = qnet_forward(obs, z, a, packed)
    jax.block_until_ready(q)
    assert q.shape == (BATCH, 1)

    # Tight check against the precision-matched (bf16-weight) reference.
    q_matched = qnet_reference_bf16(obs, z, a, params)
    assert jnp.allclose(q, q_matched, atol=1e-3, rtol=1e-3), \
        "mismatch vs bf16-matched reference"

    # Loose sanity check against the full-f32 PyTorch-semantics reference
    # (tolerance covers only the bf16 weight quantization).
    q_ref = qnet_reference(obs, z, a, params)
    assert jnp.allclose(q, q_ref, atol=3e-2, rtol=3e-2), \
        "mismatch vs f32 reference"

    print("KERNEL_OK")
</pallas_src>

<mosaic_0001>
module attributes {stable_mosaic.version = 11 : i64} {
  func.func @qnet_kernel(%arg0: i32, %arg1: memref<8x14xbf16, #tpu.memory_space<vmem>>, %arg2: memref<14x768xbf16, #tpu.memory_space<vmem>>, %arg3: memref<768x768xbf16, #tpu.memory_space<vmem>>, %arg4: memref<4x768xf32, #tpu.memory_space<vmem>>, %arg5: memref<8x1xf32, #tpu.memory_space<vmem>>) attributes {dimension_semantics = [#tpu.dimension_semantics<parallel>], iteration_bounds = array<i64: 1>, scalar_prefetch = 0 : i64, scratch_operands = 0 : i64, tpu.core_type = #tpu.core_type<tc>, window_params = [{transform_indices = @transform_0, window_bounds = array<i64: 8, 14>}, {pipeline_mode = #tpu.pipeline_mode<synchronous>, transform_indices = @transform_1, window_bounds = array<i64: 14, 768>}, {pipeline_mode = #tpu.pipeline_mode<synchronous>, transform_indices = @transform_2, window_bounds = array<i64: 768, 768>}, {pipeline_mode = #tpu.pipeline_mode<synchronous>, transform_indices = @transform_3, window_bounds = array<i64: 4, 768>}, {transform_indices = @transform_4, window_bounds = array<i64: 8, 1>}]} {
    %c0 = arith.constant 0 : index
    %c0_0 = arith.constant 0 : index
    %0 = vector.load %arg4[%c0, %c0_0] : memref<4x768xf32, #tpu.memory_space<vmem>>, vector<1x768xf32>
    %c1 = arith.constant 1 : index
    %c0_1 = arith.constant 0 : index
    %1 = vector.load %arg4[%c1, %c0_1] : memref<4x768xf32, #tpu.memory_space<vmem>>, vector<1x768xf32>
    %c2 = arith.constant 2 : index
    %c0_2 = arith.constant 0 : index
    %2 = vector.load %arg4[%c2, %c0_2] : memref<4x768xf32, #tpu.memory_space<vmem>>, vector<1x768xf32>
    %c3 = arith.constant 3 : index
    %c0_3 = arith.constant 0 : index
    %3 = vector.load %arg4[%c3, %c0_3] : memref<4x768xf32, #tpu.memory_space<vmem>>, vector<1x1xf32>
    %c0_4 = arith.constant 0 : index
    %c0_5 = arith.constant 0 : index
    %4 = vector.load %arg1[%c0_4, %c0_5] : memref<8x14xbf16, #tpu.memory_space<vmem>>, vector<8x14xbf16>
    %c0_6 = arith.constant 0 : index
    %c0_7 = arith.constant 0 : index
    %5 = vector.load %arg2[%c0_6, %c0_7] : memref<14x768xbf16, #tpu.memory_space<vmem>>, vector<14x768xbf16>
    %cst = arith.constant dense<0.000000e+00> : vector<8x768xf32>
    %6 = tpu.matmul %4, %5, %cst {dimension_numbers = #tpu.dot_dimension_numbers<[1], [0], [0], [1], [0, 0, 1, 1], [], []>} : vector<8x14xbf16>, vector<14x768xbf16>, vector<8x768xf32> -> vector<8x768xf32>
    %7 = vector.broadcast %0 : vector<1x768xf32> to vector<8x768xf32>
    %8 = arith.addf %6, %7 : vector<8x768xf32>
    %cst_8 = arith.constant 0.000000e+00 : f32
    %9 = vector.broadcast %cst_8 : f32 to vector<8x768xf32>
    %10 = arith.maximumf %8, %9 : vector<8x768xf32>
    %11 = arith.truncf %10 : vector<8x768xf32> to vector<8x768xbf16>
    %c0_9 = arith.constant 0 : index
    %c0_10 = arith.constant 0 : index
    %12 = vector.load %arg3[%c0_9, %c0_10] : memref<768x768xbf16, #tpu.memory_space<vmem>>, vector<768x768xbf16>
    %cst_11 = arith.constant dense<0.000000e+00> : vector<8x768xf32>
    %13 = tpu.matmul %11, %12, %cst_11 {dimension_numbers = #tpu.dot_dimension_numbers<[1], [0], [0], [1], [0, 0, 1, 1], [], []>} : vector<8x768xbf16>, vector<768x768xbf16>, vector<8x768xf32> -> vector<8x768xf32>
    %14 = vector.broadcast %1 : vector<1x768xf32> to vector<8x768xf32>
    %15 = arith.addf %13, %14 : vector<8x768xf32>
    %cst_12 = arith.constant 0.000000e+00 : f32
    %16 = vector.broadcast %cst_12 : f32 to vector<8x768xf32>
    %17 = arith.maximumf %15, %16 : vector<8x768xf32>
    %18 = vector.broadcast %2 : vector<1x768xf32> to vector<8x768xf32>
    %19 = arith.mulf %17, %18 : vector<8x768xf32>
    %cst_13 = arith.constant dense<0.000000e+00> : vector<8xf32>
    %20 = vector.multi_reduction <add>, %19, %cst_13 [1] : vector<8x768xf32> to vector<8xf32>
    %21 = vector.shape_cast %20 : vector<8xf32> to vector<8x1xf32>
    %22 = vector.broadcast %3 : vector<1x1xf32> to vector<8x1xf32>
    %23 = arith.addf %21, %22 : vector<8x1xf32>
    %c0_14 = arith.constant 0 : index
    %c0_15 = arith.constant 0 : index
    %24 = vector.load %arg5[%c0_14, %c0_15] : memref<8x1xf32, #tpu.memory_space<vmem>>, vector<8x1xf32>
    tpu.vector_store %arg5[%c0_14, %c0_15], %23 {strides = array<i32>} : memref<8x1xf32, #tpu.memory_space<vmem>>, vector<8x1xf32>,
    return
  }
  func.func @transform_0(%arg0: i32) -> (i32, i32) {
    %c0_i32 = arith.constant 0 : i32
    %c0_i32_0 = arith.constant 0 : i32
    return %arg0, %c0_i32 : i32, i32
  }
  func.func @transform_1(%arg0: i32) -> (i32, i32) {
    %c0_i32 = arith.constant 0 : i32
    %c0_i32_0 = arith.constant 0 : i32
    %c0_i32_1 = arith.constant 0 : i32
    return %c0_i32, %c0_i32_0 : i32, i32
  }
  func.func @transform_2(%arg0: i32) -> (i32, i32) {
    %c0_i32 = arith.constant 0 : i32
    %c0_i32_0 = arith.constant 0 : i32
    %c0_i32_1 = arith.constant 0 : i32
    return %c0_i32, %c0_i32_0 : i32, i32
  }
  func.func @transform_3(%arg0: i32) -> (i32, i32) {
    %c0_i32 = arith.constant 0 : i32
    %c0_i32_0 = arith.constant 0 : i32
    %c0_i32_1 = arith.constant 0 : i32
    return %c0_i32, %c0_i32_0 : i32, i32
  }
  func.func @transform_4(%arg0: i32) -> (i32, i32) {
    %c0_i32 = arith.constant 0 : i32
    %c0_i32_0 = arith.constant 0 : i32
    return %arg0, %c0_i32 : i32, i32
  }
}

</mosaic_0001>

<llo_original>
// kernel: tpu_custom_call.1
$region0: #{tpu_custom_call.1}
  #allocation0 [shape = 'u32[]', space=smem, size = 0x4, offset = 0x4, fixed_abs, tag = 'smem constant byte address 0x4 - core index']
  #allocation1 [shape = 'u32[144,128]{1,0:T(1,128)}', space=vmem, size = 0x12000, scoped, tag = 'internal scratch']
  %s0 = inlined_call_operand.hbm [shape: bf16[8,14], index: 0, kind: input, shape index: {}]
  %s1 = inlined_call_operand.hbm [shape: bf16[14,768], index: 1, kind: input, shape index: {}]
  %s2 = inlined_call_operand.hbm [shape: bf16[768,768], index: 2, kind: input, shape index: {}]
  %s3 = inlined_call_operand.hbm [shape: f32[4,768], index: 3, kind: input, shape index: {}]
  %s4 = inlined_call_operand.vmem [shape: f32[8,1], index: 4, kind: output, shape index: {}]
  %s5 = sld [smem:[#allocation0]]
  $region42: #{tpu_custom_call.1} parent=0
    _
  %s7 = ssub.s32 1, %s5
  %s8 = scalar_select 0, %s7, %s5
  $region1: #{tpu_custom_call.1} parent=0
    #allocation2 [shape = 'u8[2048]{0}', space=vmem, size = 0x800, scoped, tag = 'input window, operand 0, single buffered']
    #allocation3 [shape = 's32[1]{0}', space=sflag, size = 0x4, scoped, tag = 'scoped memory for tpu_custom_call.1']
    #allocation4 [shape = 'u8[24576]{0}', space=vmem, size = 0x6000, scoped, tag = 'input window, operand 1, single buffered']
    #allocation5 [shape = 's32[1]{0}', space=sflag, size = 0x4, scoped, tag = 'scoped memory for tpu_custom_call.1']
    #allocation6 [shape = 'u8[1179648]{0}', space=vmem, size = 0x120000, scoped, tag = 'input window, operand 2, single buffered']
    #allocation7 [shape = 'u8[12288]{0}', space=vmem, size = 0x3000, scoped, tag = 'input window, operand 3, single buffered']
    #allocation8 [shape = 's32[1]{0}', space=sflag, size = 0x4, scoped, tag = 'scoped memory for tpu_custom_call.1']
    %9 = vsyncpa [#allocation3], 0
    %10 = vsyncpa [#allocation5], 0
    %11 = vsyncpa [#allocation8], 0
    // Predicated region
    $region2: #{tpu_custom_call.1} parent=1 // pred_check
      _
    $region3: #{tpu_custom_call.1} parent=1 // pred_check_branch
      %13 = sbr.rel (0) target = $region5
    $region4: #{tpu_custom_call.1} parent=1 // pred_region
      %s15 = ssub.s32 64, 64
      %16 = vsyncadd [#allocation3], %s15
      %s18 = sshll.u32 [#allocation2], 4
      %s19 = int_to_ptr.vmem [resolvable:$true] %s18
      %21 = dma.hbm_to_vmem [thread:$0]  %s0, 64, %s19, [#allocation3]
    $region5: #{tpu_custom_call.1} parent=1 // pred_fallthru
      _
    // Predicated region
    $region6: #{tpu_custom_call.1} parent=1 // pred_check
      _
    $region7: #{tpu_custom_call.1} parent=1 // pred_check_branch
      %23 = sbr.rel (0) target = $region9
    $region8: #{tpu_custom_call.1} parent=1 // pred_region
      %s25 = ssub.s32 768, 768
      %26 = vsyncadd [#allocation5], %s25
      %s27 = sshll.u32 [#allocation4], 4
      %s28 = int_to_ptr.vmem [resolvable:$true] %s27
      %33 = dma.hbm_to_vmem [thread:$0]  %s1, 768, %s28, [#allocation5], 384, 384, 24
    $region9: #{tpu_custom_call.1} parent=1 // pred_fallthru
      _
    // Predicated region
    $region10: #{tpu_custom_call.1} parent=1 // pred_check
      _
    $region11: #{tpu_custom_call.1} parent=1 // pred_check_branch
      %35 = sbr.rel (0) target = $region13
    $region12: #{tpu_custom_call.1} parent=1 // pred_region
      %s37 = ssub.s32 36864, 36864
      %38 = vsyncadd [#allocation5], %s37
      %s39 = sshll.u32 [#allocation6], 4
      %s40 = int_to_ptr.vmem [resolvable:$true] %s39
      %45 = dma.hbm_to_vmem [thread:$0]  %s2, 36864, %s40, [#allocation5], 384, 384, 24
    $region13: #{tpu_custom_call.1} parent=1 // pred_fallthru
      _
    // Predicated region
    $region14: #{tpu_custom_call.1} parent=1 // pred_check
      _
    $region15: #{tpu_custom_call.1} parent=1 // pred_check_branch
      %47 = sbr.rel (0) target = $region17
    $region16: #{tpu_custom_call.1} parent=1 // pred_region
      %s49 = ssub.s32 384, 384
      %50 = vsyncadd [#allocation8], %s49
      %s52 = sshll.u32 [#allocation7], 4
      %s53 = int_to_ptr.vmem [resolvable:$true] %s52
      %55 = dma.hbm_to_vmem [thread:$0]  %s3, 384, %s53, [#allocation8]
    $region17: #{tpu_custom_call.1} parent=1 // pred_fallthru
      _
    // Predicated region
    $region18: #{tpu_custom_call.1} parent=1 // pred_check
      _
    $region19: #{tpu_custom_call.1} parent=1 // pred_check_branch
      %57 = sbr.rel (0) target = $region21
    $region20: #{tpu_custom_call.1} parent=1 // pred_region
      %58 = dma.done [#allocation3], 64
    $region21: #{tpu_custom_call.1} parent=1 // pred_fallthru
      _
    // Predicated region
    $region22: #{tpu_custom_call.1} parent=1 // pred_check
      _
    $region23: #{tpu_custom_call.1} parent=1 // pred_check_branch
      %60 = sbr.rel (0) target = $region25
    $region24: #{tpu_custom_call.1} parent=1 // pred_region
      %61 = dma.done [#allocation5], 768
    $region25: #{tpu_custom_call.1} parent=1 // pred_fallthru
      _
    // Predicated region
    $region26: #{tpu_custom_call.1} parent=1 // pred_check
      _
    $region27: #{tpu_custom_call.1} parent=1 // pred_check_branch
      %63 = sbr.rel (0) target = $region29
    $region28: #{tpu_custom_call.1} parent=1 // pred_region
      %64 = dma.done [#allocation5], 36864
    $region29: #{tpu_custom_call.1} parent=1 // pred_fallthru
      _
    // Predicated region
    $region30: #{tpu_custom_call.1} parent=1 // pred_check
      _
    $region31: #{tpu_custom_call.1} parent=1 // pred_check_branch
      %66 = sbr.rel (0) target = $region33
    $region32: #{tpu_custom_call.1} parent=1 // pred_region
      %67 = dma.done [#allocation8], 384
    $region33: #{tpu_custom_call.1} parent=1 // pred_fallthru
      _
    %v69 = vld [vmem:[#allocation7] ss:$4 sm:$0x3f]
    %s70 = scalar_lea.vmem [#allocation7], 1
    %v71 = vld [vmem:[%s70] ss:$4 sm:$0x3f]
    %s72 = scalar_lea.vmem [#allocation7], 2
    %v73 = vld [vmem:[%s72] ss:$4 sm:$0x3f]
    %v74 = vld [vmem:[#allocation7 + $0x3] sm:$0x1]
    %v75 = vld [vmem:[#allocation2] sm:$0xf]
    %v76 = vld [vmem:[#allocation4] sm:$0xff]
    %v77 = vld [vmem:[#allocation4 + $0x8] sm:$0xff]
    %v78 = vld [vmem:[#allocation4 + $0x10] sm:$0xff]
    %v79 = vld [vmem:[#allocation4 + $0x18] sm:$0x77]
    %v80 = vld [vmem:[#allocation4 + $0x20] sm:$0x77]
    %v81 = vld [vmem:[#allocation4 + $0x28] sm:$0x77]
    %v83 = vlaneseq
    %v84 = vshrl.u32 %v83, 7
    %v85 = vsub.s32 0, %v84
    %v86 = vrot.slane %v69, %v85
    %v87 = vlaneseq
    %v88 = vshrl.u32 %v87, 7
    %v89 = vsub.s32 1, %v88
    %v90 = vrot.slane %v69, %v89
    %v91 = vlaneseq
    %v92 = vshrl.u32 %v91, 7
    %v93 = vsub.s32 2, %v92
    %v94 = vrot.slane %v69, %v93
    %v95 = vlaneseq
    %v96 = vshrl.u32 %v95, 7
    %v97 = vsub.s32 3, %v96
    %v98 = vrot.slane %v69, %v97
    %v99 = vlaneseq
    %v100 = vshrl.u32 %v99, 7
    %v101 = vsub.s32 4, %v100
    %v102 = vrot.slane %v69, %v101
    %v103 = vlaneseq
    %v104 = vshrl.u32 %v103, 7
    %v105 = vsub.s32 5, %v104
    %v106 = vrot.slane %v69, %v105
    %v119 = vunpack.c.l.b16 %v76
    %v120 = vunpack.c.h.b16 %v76
    %v121 = vunpack.c.l.b16 %v77
    %v122 = vunpack.c.h.b16 %v77
    %v123 = vunpack.c.l.b16 %v78
    %v124 = vunpack.c.h.b16 %v78
    %v125 = vunpack.c.l.b16 %v79
    %v126 = vunpack.c.h.b16 %v79
    %v127 = vunpack.c.l.b16 %v80
    %v128 = vunpack.c.h.b16 %v80
    %v129 = vunpack.c.l.b16 %v81
    %v130 = vunpack.c.h.b16 %v81
    %v131 = vpack.c.b16 %v125, %v119
    %v132 = vpack.c.b16 %v126, %v120
    %v133 = vpack.c.b16 %v127, %v121
    %v134 = vpack.c.b16 %v128, %v122
    %v135 = vpack.c.b16 %v129, %v123
    %v136 = vpack.c.b16 %v130, %v124
    %vm137 = vcmask 113664
    %v139 = vsel %vm137, %v75, 0
    %vm141 = vcmask 1046528
    %v143 = vsel %vm141, %v131, 0
    %v146 = vsel %vm141, %v132, 0
    %v149 = vsel %vm141, %v133, 0
    %v152 = vsel %vm141, %v134, 0
    %v155 = vsel %vm141, %v135, 0
    %v158 = vsel %vm141, %v136, 0
    %160 = vmatprep.subr.bf16.mxu0 %v146
    %161 = vmatpush1.bf16.msra.mxu0 %v143
    %162 = vmatprep.subr.bf16.mxu0 0
    %163 = vmatpush1.bf16.msra.mxu0 0
    %164 = vmatprep.subr.bf16.mxu0 0
    %165 = vmatpush1.bf16.msra.mxu0 0
    %166 = vmatprep.subr.bf16.mxu0 0
    %167 = vmatpush1.bf16.msra.mxu0 0
    %168 = vmatprep.subr.bf16.mxu0 0
    %169 = vmatpush1.bf16.msra.mxu0 0
    %170 = vmatprep.subr.bf16.mxu0 0
    %171 = vmatpush1.bf16.msra.mxu0 0
    %172 = vmatprep.subr.bf16.mxu0 0
    %173 = vmatpush1.bf16.msra.mxu0 0
    %174 = vmatprep.subr.bf16.mxu0 0
    %175 = vmatpush1.bf16.msra.mxu0 0
    %176 = vmatprep.subr.bf16.mxu0 0
    %177 = vmatpush1.bf16.msra.mxu0 0
    %178 = vmatprep.subr.bf16.mxu0 0
    %179 = vmatpush1.bf16.msra.mxu0 0
    %180 = vmatprep.subr.bf16.mxu0 0
    %181 = vmatpush1.bf16.msra.mxu0 0
    %182 = vmatprep.subr.bf16.mxu0 0
    %183 = vmatpush1.bf16.msra.mxu0 0
    %184 = vmatprep.subr.bf16.mxu0 0
    %185 = vmatpush1.bf16.msra.mxu0 0
    %186 = vmatprep.subr.bf16.mxu0 0
    %187 = vmatpush1.bf16.msra.mxu0 0
    %188 = vmatprep.subr.bf16.mxu0 0
    %189 = vmatpush1.bf16.msra.mxu0 0
    %190 = vmatprep.subr.bf16.mxu0 0
    %191 = vmatpush1.bf16.msra.mxu0 0
    %192 = vmatprep.mubr.bf16.mxu0 0
    %193 = vmatmul.mubr.bf16.gmra.mrb[0].mxu0 %v139
    %v194 = vpop.f32.mrb[0].mxu0
    %v195 = vadd.f32 %v86, %v194
    %v196 = vpop.f32.mrb[0].mxu0
    %v197 = vadd.f32 %v90, %v196
    %v198 = vpop.f32.mrb[0].mxu0
    %v199 = vpop.f32.mrb[0].mxu0
    %200 = vdwg.mxu0
    %201 = vmatprep.subr.bf16.mxu0 %v152
    %202 = vmatpush1.bf16.msra.mxu0 %v149
    %203 = vmatprep.subr.bf16.mxu0 0
    %204 = vmatpush1.bf16.msra.mxu0 0
    %205 = vmatprep.subr.bf16.mxu0 0
    %206 = vmatpush1.bf16.msra.mxu0 0
    %207 = vmatprep.subr.bf16.mxu0 0
    %208 = vmatpush1.bf16.msra.mxu0 0
    %209 = vmatprep.subr.bf16.mxu0 0
    %210 = vmatpush1.bf16.msra.mxu0 0
    %211 = vmatprep.subr.bf16.mxu0 0
    %212 = vmatpush1.bf16.msra.mxu0 0
    %213 = vmatprep.subr.bf16.mxu0 0
    %214 = vmatpush1.bf16.msra.mxu0 0
    %215 = vmatprep.subr.bf16.mxu0 0
    %216 = vmatpush1.bf16.msra.mxu0 0
    %217 = vmatprep.subr.bf16.mxu0 0
    %218 = vmatpush1.bf16.msra.mxu0 0
    %219 = vmatprep.subr.bf16.mxu0 0
    %220 = vmatpush1.bf16.msra.mxu0 0
    %221 = vmatprep.subr.bf16.mxu0 0
    %222 = vmatpush1.bf16.msra.mxu0 0
    %223 = vmatprep.subr.bf16.mxu0 0
    %224 = vmatpush1.bf16.msra.mxu0 0
    %225 = vmatprep.subr.bf16.mxu0 0
    %226 = vmatpush1.bf16.msra.mxu0 0
    %227 = vmatprep.subr.bf16.mxu0 0
    %228 = vmatpush1.bf16.msra.mxu0 0
    %229 = vmatprep.subr.bf16.mxu0 0
    %230 = vmatpush1.bf16.msra.mxu0 0
    %231 = vmatprep.subr.bf16.mxu0 0
    %232 = vmatpush1.bf16.msra.mxu0 0
    %233 = vmatprep.mubr.bf16.mxu0 0
    %234 = vmatmul.mubr.bf16.gmra.mrb[0].mxu0 %v139
    %v235 = vpop.f32.mrb[0].mxu0
    %v236 = vadd.f32 %v94, %v235
    %v237 = vpop.f32.mrb[0].mxu0
    %v238 = vadd.f32 %v98, %v237
    %v239 = vpop.f32.mrb[0].mxu0
    %v240 = vpop.f32.mrb[0].mxu0
    %241 = vdwg.mxu0
    %242 = vmatprep.subr.bf16.mxu0 %v158
    %243 = vmatpush1.bf16.msra.mxu0 %v155
    %244 = vmatprep.subr.bf16.mxu0 0
    %245 = vmatpush1.bf16.msra.mxu0 0
    %246 = vmatprep.subr.bf16.mxu0 0
    %247 = vmatpush1.bf16.msra.mxu0 0
    %248 = vmatprep.subr.bf16.mxu0 0
    %249 = vmatpush1.bf16.msra.mxu0 0
    %250 = vmatprep.subr.bf16.mxu0 0
    %251 = vmatpush1.bf16.msra.mxu0 0
    %252 = vmatprep.subr.bf16.mxu0 0
    %253 = vmatpush1.bf16.msra.mxu0 0
    %254 = vmatprep.subr.bf16.mxu0 0
    %255 = vmatpush1.bf16.msra.mxu0 0
    %256 = vmatprep.subr.bf16.mxu0 0
    %257 = vmatpush1.bf16.msra.mxu0 0
    %258 = vmatprep.subr.bf16.mxu0 0
    %259 = vmatpush1.bf16.msra.mxu0 0
    %260 = vmatprep.subr.bf16.mxu0 0
    %261 = vmatpush1.bf16.msra.mxu0 0
    %262 = vmatprep.subr.bf16.mxu0 0
    %263 = vmatpush1.bf16.msra.mxu0 0
    %264 = vmatprep.subr.bf16.mxu0 0
    %265 = vmatpush1.bf16.msra.mxu0 0
    %266 = vmatprep.subr.bf16.mxu0 0
    %267 = vmatpush1.bf16.msra.mxu0 0
    %268 = vmatprep.subr.bf16.mxu0 0
    %269 = vmatpush1.bf16.msra.mxu0 0
    %270 = vmatprep.subr.bf16.mxu0 0
    %271 = vmatpush1.bf16.msra.mxu0 0
    %272 = vmatprep.subr.bf16.mxu0 0
    %273 = vmatpush1.bf16.msra.mxu0 0
    %274 = vmatprep.mubr.bf16.mxu0 0
    %275 = vmatmul.mubr.bf16.gmra.mrb[0].mxu0 %v139
    %v276 = vpop.f32.mrb[0].mxu0
    %v277 = vadd.f32 %v102, %v276
    %v278 = vpop.f32.mrb[0].mxu0
    %v279 = vadd.f32 %v106, %v278
    %v280 = vpop.f32.mrb[0].mxu0
    %v281 = vpop.f32.mrb[0].mxu0
    %282 = vdwg.mxu0
    %v283 = vmax.f32 %v195, 0.0
    %v284 = vmax.f32 %v197, 0.0
    %v285 = vmax.f32 %v236, 0.0
    %v286 = vmax.f32 %v238, 0.0
    %v287 = vmax.f32 %v277, 0.0
    %v288 = vmax.f32 %v279, 0.0
    %v289 = vpack.c.bf16 %v283, %v283
    %v290 = vpack.c.bf16 %v284, %v284
    %v291 = vpack.c.bf16 %v285, %v285
    %v292 = vpack.c.bf16 %v286, %v286
    %v293 = vpack.c.bf16 %v287, %v287
    %v294 = vpack.c.bf16 %v288, %v288
    %v295 = vld [vmem:[#allocation6] sm:$0xff]
    %v296 = vld [vmem:[#allocation6 + $0x8] sm:$0xff]
    %v297 = vld [vmem:[#allocation6 + $0x10] sm:$0xff]
    %v298 = vld [vmem:[#allocation6 + $0x18] sm:$0xff]
    %v299 = vld [vmem:[#allocation6 + $0x20] sm:$0xff]
    %v300 = vld [vmem:[#allocation6 + $0x28] sm:$0xff]
    %v301 = vld [vmem:[#allocation6 + $0x30] sm:$0xff]
    %v302 = vld [vmem:[#allocation6 + $0x38] sm:$0xff]
    %v303 = vld [vmem:[#allocation6 + $0x40] sm:$0xff]
    %v304 = vld [vmem:[#allocation6 + $0x48] sm:$0xff]
    %v305 = vld [vmem:[#allocation6 + $0x50] sm:$0xff]
    %v306 = vld [vmem:[#allocation6 + $0x58] sm:$0xff]
    %v307 = vld [vmem:[#allocation6 + $0x60] sm:$0xff]
    %v308 = vld [vmem:[#allocation6 + $0x68] sm:$0xff]
    %v309 = vld [vmem:[#allocation6 + $0x70] sm:$0xff]
    %v310 = vld [vmem:[#allocation6 + $0x78] sm:$0xff]
    %v311 = vld [vmem:[#allocation6 + $0x80] sm:$0xff]
    %v312 = vld [vmem:[#allocation6 + $0x88] sm:$0xff]
    %v313 = vld [vmem:[#allocation6 + $0x90] sm:$0xff]
    %v314 = vld [vmem:[#allocation6 + $0x98] sm:$0xff]
    %v315 = vld [vmem:[#allocation6 + $0xa0] sm:$0xff]
    %v316 = vld [vmem:[#allocation6 + $0xa8] sm:$0xff]
    %v317 = vld [vmem:[#allocation6 + $0xb0] sm:$0xff]
    %v318 = vld [vmem:[#allocation6 + $0xb8] sm:$0xff]
    %v319 = vld [vmem:[#allocation6 + $0xc0] sm:$0xff]
    %v320 = vld [vmem:[#allocation6 + $0xc8] sm:$0xff]
    %v321 = vld [vmem:[#allocation6 + $0xd0] sm:$0xff]
    %v322 = vld [vmem:[#allocation6 + $0xd8] sm:$0xff]
    %v323 = vld [vmem:[#allocation6 + $0xe0] sm:$0xff]
    %v324 = vld [vmem:[#allocation6 + $0xe8] sm:$0xff]
    %v325 = vld [vmem:[#allocation6 + $0xf0] sm:$0xff]
    %v326 = vld [vmem:[#allocation6 + $0xf8] sm:$0xff]
    %v327 = vld [vmem:[#allocation6 + $0x100] sm:$0xff]
    %v328 = vld [vmem:[#allocation6 + $0x108] sm:$0xff]
    %v329 = vld [vmem:[#allocation6 + $0x110] sm:$0xff]
    %v330 = vld [vmem:[#allocation6 + $0x118] sm:$0xff]
    %v331 = vld [vmem:[#allocation6 + $0x120] sm:$0xff]
    %v332 = vld [vmem:[#allocation6 + $0x128] sm:$0xff]
    %v333 = vld [vmem:[#allocation6 + $0x130] sm:$0xff]
    %v334 = vld [vmem:[#allocation6 + $0x138] sm:$0xff]
    %v335 = vld [vmem:[#allocation6 + $0x140] sm:$0xff]
    %v336 = vld [vmem:[#allocation6 + $0x148] sm:$0xff]
    %v337 = vld [vmem:[#allocation6 + $0x150] sm:$0xff]
    %v338 = vld [vmem:[#allocation6 + $0x158] sm:$0xff]
    %v339 = vld [vmem:[#allocation6 + $0x160] sm:$0xff]
    %v340 = vld [vmem:[#allocation6 + $0x168] sm:$0xff]
    %v341 = vld [vmem:[#allocation6 + $0x170] sm:$0xff]
    %v342 = vld [vmem:[#allocation6 + $0x178] sm:$0xff]
    %v343 = vld [vmem:[#allocation6 + $0x180] sm:$0xff]
    %v344 = vld [vmem:[#allocation6 + $0x188] sm:$0xff]
    %v345 = vld [vmem:[#allocation6 + $0x190] sm:$0xff]
    %v346 = vld [vmem:[#allocation6 + $0x198] sm:$0xff]
    %v347 = vld [vmem:[#allocation6 + $0x1a0] sm:$0xff]
    %v348 = vld [vmem:[#allocation6 + $0x1a8] sm:$0xff]
    %v349 = vld [vmem:[#allocation6 + $0x1b0] sm:$0xff]
    %v350 = vld [vmem:[#allocation6 + $0x1b8] sm:$0xff]
    %v351 = vld [vmem:[#allocation6 + $0x1c0] sm:$0xff]
    %v352 = vld [vmem:[#allocation6 + $0x1c8] sm:$0xff]
    %v353 = vld [vmem:[#allocation6 + $0x1d0] sm:$0xff]
    %v354 = vld [vmem:[#allocation6 + $0x1d8] sm:$0xff]
    %v355 = vld [vmem:[#allocation6 + $0x1e0] sm:$0xff]
    %v356 = vld [vmem:[#allocation6 + $0x1e8] sm:$0xff]
    %v357 = vld [vmem:[#allocation6 + $0x1f0] sm:$0xff]
    %v358 = vld [vmem:[#allocation6 + $0x1f8] sm:$0xff]
    %v359 = vld [vmem:[#allocation6 + $0x200] sm:$0xff]
    %v360 = vld [vmem:[#allocation6 + $0x208] sm:$0xff]
    %v361 = vld [vmem:[#allocation6 + $0x210] sm:$0xff]
    %v362 = vld [vmem:[#allocation6 + $0x218] sm:$0xff]
    %v363 = vld [vmem:[#allocation6 + $0x220] sm:$0xff]
    %v364 = vld [vmem:[#allocation6 + $0x228] sm:$0xff]
    %v365 = vld [vmem:[#allocation6 + $0x230] sm:$0xff]
    %v366 = vld [vmem:[#allocation6 + $0x238] sm:$0xff]
    %v367 = vld [vmem:[#allocation6 + $0x240] sm:$0xff]
    %v368 = vld [vmem:[#allocation6 + $0x248] sm:$0xff]
    %v369 = vld [vmem:[#allocation6 + $0x250] sm:$0xff]
    %v370 = vld [vmem:[#allocation6 + $0x258] sm:$0xff]
    %v371 = vld [vmem:[#allocation6 + $0x260] sm:$0xff]
    %v372 = vld [vmem:[#allocation6 + $0x268] sm:$0xff]
    %v373 = vld [vmem:[#allocation6 + $0x270] sm:$0xff]
    %v374 = vld [vmem:[#allocation6 + $0x278] sm:$0xff]
    %v375 = vld [vmem:[#allocation6 + $0x280] sm:$0xff]
    %v376 = vld [vmem:[#allocation6 + $0x288] sm:$0xff]
    %v377 = vld [vmem:[#allocation6 + $0x290] sm:$0xff]
    %v378 = vld [vmem:[#allocation6 + $0x298] sm:$0xff]
    %v379 = vld [vmem:[#allocation6 + $0x2a0] sm:$0xff]
    %v380 = vld [vmem:[#allocation6 + $0x2a8] sm:$0xff]
    %v381 = vld [vmem:[#allocation6 + $0x2b0] sm:$0xff]
    %v382 = vld [vmem:[#allocation6 + $0x2b8] sm:$0xff]
    %v383 = vld [vmem:[#allocation6 + $0x2c0] sm:$0xff]
    %v384 = vld [vmem:[#allocation6 + $0x2c8] sm:$0xff]
    %v385 = vld [vmem:[#allocation6 + $0x2d0] sm:$0xff]
    %v386 = vld [vmem:[#allocation6 + $0x2d8] sm:$0xff]
    %v387 = vld [vmem:[#allocation6 + $0x2e0] sm:$0xff]
    %v388 = vld [vmem:[#allocation6 + $0x2e8] sm:$0xff]
    %v389 = vld [vmem:[#allocation6 + $0x2f0] sm:$0xff]
    %v390 = vld [vmem:[#allocation6 + $0x2f8] sm:$0xff]
    %v391 = vld [vmem:[#allocation6 + $0x300] sm:$0xff]
    %v392 = vld [vmem:[#allocation6 + $0x308] sm:$0xff]
    %v393 = vld [vmem:[#allocation6 + $0x310] sm:$0xff]
    %v394 = vld [vmem:[#allocation6 + $0x318] sm:$0xff]
    %v395 = vld [vmem:[#allocation6 + $0x320] sm:$0xff]
    %v396 = vld [vmem:[#allocation6 + $0x328] sm:$0xff]
    %v397 = vld [vmem:[#allocation6 + $0x330] sm:$0xff]
    %v398 = vld [vmem:[#allocation6 + $0x338] sm:$0xff]
    %v399 = vld [vmem:[#allocation6 + $0x340] sm:$0xff]
    %v400 = vld [vmem:[#allocation6 + $0x348] sm:$0xff]
    %v401 = vld [vmem:[#allocation6 + $0x350] sm:$0xff]
    %v402 = vld [vmem:[#allocation6 + $0x358] sm:$0xff]
    %v403 = vld [vmem:[#allocation6 + $0x360] sm:$0xff]
    %v404 = vld [vmem:[#allocation6 + $0x368] sm:$0xff]
    %v405 = vld [vmem:[#allocation6 + $0x370] sm:$0xff]
    %v406 = vld [vmem:[#allocation6 + $0x378] sm:$0xff]
    %v407 = vld [vmem:[#allocation6 + $0x380] sm:$0xff]
    %v408 = vld [vmem:[#allocation6 + $0x388] sm:$0xff]
    %v409 = vld [vmem:[#allocation6 + $0x390] sm:$0xff]
    %v410 = vld [vmem:[#allocation6 + $0x398] sm:$0xff]
    %v411 = vld [vmem:[#allocation6 + $0x3a0] sm:$0xff]
    %v412 = vld [vmem:[#allocation6 + $0x3a8] sm:$0xff]
    %v413 = vld [vmem:[#allocation6 + $0x3b0] sm:$0xff]
    %v414 = vld [vmem:[#allocation6 + $0x3b8] sm:$0xff]
    %v415 = vld [vmem:[#allocation6 + $0x3c0] sm:$0xff]
    %v416 = vld [vmem:[#allocation6 + $0x3c8] sm:$0xff]
    %v417 = vld [vmem:[#allocation6 + $0x3d0] sm:$0xff]
    %v418 = vld [vmem:[#allocation6 + $0x3d8] sm:$0xff]
    %v419 = vld [vmem:[#allocation6 + $0x3e0] sm:$0xff]
    %v420 = vld [vmem:[#allocation6 + $0x3e8] sm:$0xff]
    %v421 = vld [vmem:[#allocation6 + $0x3f0] sm:$0xff]
    %v422 = vld [vmem:[#allocation6 + $0x3f8] sm:$0xff]
    %v423 = vld [vmem:[#allocation6 + $0x400] sm:$0xff]
    %v424 = vld [vmem:[#allocation6 + $0x408] sm:$0xff]
    %v425 = vld [vmem:[#allocation6 + $0x410] sm:$0xff]
    %v426 = vld [vmem:[#allocation6 + $0x418] sm:$0xff]
    %v427 = vld [vmem:[#allocation6 + $0x420] sm:$0xff]
    %v428 = vld [vmem:[#allocation6 + $0x428] sm:$0xff]
    %v429 = vld [vmem:[#allocation6 + $0x430] sm:$0xff]
    %v430 = vld [vmem:[#allocation6 + $0x438] sm:$0xff]
    %v431 = vld [vmem:[#allocation6 + $0x440] sm:$0xff]
    %v432 = vld [vmem:[#allocation6 + $0x448] sm:$0xff]
    %v433 = vld [vmem:[#allocation6 + $0x450] sm:$0xff]
    %v434 = vld [vmem:[#allocation6 + $0x458] sm:$0xff]
    %v435 = vld [vmem:[#allocation6 + $0x460] sm:$0xff]
    %v436 = vld [vmem:[#allocation6 + $0x468] sm:$0xff]
    %v437 = vld [vmem:[#allocation6 + $0x470] sm:$0xff]
    %v438 = vld [vmem:[#allocation6 + $0x478] sm:$0xff]
    %v439 = vld [vmem:[#allocation6 + $0x480] sm:$0xff]
    %v440 = vld [vmem:[#allocation6 + $0x488] sm:$0xff]
    %v441 = vld [vmem:[#allocation6 + $0x490] sm:$0xff]
    %v442 = vld [vmem:[#allocation6 + $0x498] sm:$0xff]
    %v443 = vld [vmem:[#allocation6 + $0x4a0] sm:$0xff]
    %v444 = vld [vmem:[#allocation6 + $0x4a8] sm:$0xff]
    %v445 = vld [vmem:[#allocation6 + $0x4b0] sm:$0xff]
    %v446 = vld [vmem:[#allocation6 + $0x4b8] sm:$0xff]
    %v447 = vld [vmem:[#allocation6 + $0x4c0] sm:$0xff]
    %v448 = vld [vmem:[#allocation6 + $0x4c8] sm:$0xff]
    %v449 = vld [vmem:[#allocation6 + $0x4d0] sm:$0xff]
    %v450 = vld [vmem:[#allocation6 + $0x4d8] sm:$0xff]
    %v451 = vld [vmem:[#allocation6 + $0x4e0] sm:$0xff]
    %v452 = vld [vmem:[#allocation6 + $0x4e8] sm:$0xff]
    %v453 = vld [vmem:[#allocation6 + $0x4f0] sm:$0xff]
    %v454 = vld [vmem:[#allocation6 + $0x4f8] sm:$0xff]
    %v455 = vld [vmem:[#allocation6 + $0x500] sm:$0xff]
    %v456 = vld [vmem:[#allocation6 + $0x508] sm:$0xff]
    %v457 = vld [vmem:[#allocation6 + $0x510] sm:$0xff]
    %v458 = vld [vmem:[#allocation6 + $0x518] sm:$0xff]
    %v459 = vld [vmem:[#allocation6 + $0x520] sm:$0xff]
    %v460 = vld [vmem:[#allocation6 + $0x528] sm:$0xff]
    %v461 = vld [vmem:[#allocation6 + $0x530] sm:$0xff]
    %v462 = vld [vmem:[#allocation6 + $0x538] sm:$0xff]
    %v463 = vld [vmem:[#allocation6 + $0x540] sm:$0xff]
    %v464 = vld [vmem:[#allocation6 + $0x548] sm:$0xff]
    %v465 = vld [vmem:[#allocation6 + $0x550] sm:$0xff]
    %v466 = vld [vmem:[#allocation6 + $0x558] sm:$0xff]
    %v467 = vld [vmem:[#allocation6 + $0x560] sm:$0xff]
    %v468 = vld [vmem:[#allocation6 + $0x568] sm:$0xff]
    %v469 = vld [vmem:[#allocation6 + $0x570] sm:$0xff]
    %v470 = vld [vmem:[#allocation6 + $0x578] sm:$0xff]
    %v471 = vld [vmem:[#allocation6 + $0x580] sm:$0xff]
    %v472 = vld [vmem:[#allocation6 + $0x588] sm:$0xff]
    %v473 = vld [vmem:[#allocation6 + $0x590] sm:$0xff]
    %v474 = vld [vmem:[#allocation6 + $0x598] sm:$0xff]
    %v475 = vld [vmem:[#allocation6 + $0x5a0] sm:$0xff]
    %v476 = vld [vmem:[#allocation6 + $0x5a8] sm:$0xff]
    %v477 = vld [vmem:[#allocation6 + $0x5b0] sm:$0xff]
    %v478 = vld [vmem:[#allocation6 + $0x5b8] sm:$0xff]
    %v479 = vld [vmem:[#allocation6 + $0x5c0] sm:$0xff]
    %v480 = vld [vmem:[#allocation6 + $0x5c8] sm:$0xff]
    %v481 = vld [vmem:[#allocation6 + $0x5d0] sm:$0xff]
    %v482 = vld [vmem:[#allocation6 + $0x5d8] sm:$0xff]
    %v483 = vld [vmem:[#allocation6 + $0x5e0] sm:$0xff]
    %v484 = vld [vmem:[#allocation6 + $0x5e8] sm:$0xff]
    %v485 = vld [vmem:[#allocation6 + $0x5f0] sm:$0xff]
    %v486 = vld [vmem:[#allocation6 + $0x5f8] sm:$0xff]
    %v487 = vld [vmem:[#allocation6 + $0x600] sm:$0xff]
    %v488 = vld [vmem:[#allocation6 + $0x608] sm:$0xff]
    %v489 = vld [vmem:[#allocation6 + $0x610] sm:$0xff]
    %v490 = vld [vmem:[#allocation6 + $0x618] sm:$0xff]
    %v491 = vld [vmem:[#allocation6 + $0x620] sm:$0xff]
    %v492 = vld [vmem:[#allocation6 + $0x628] sm:$0xff]
    %v493 = vld [vmem:[#allocation6 + $0x630] sm:$0xff]
    %v494 = vld [vmem:[#allocation6 + $0x638] sm:$0xff]
    %v495 = vld [vmem:[#allocation6 + $0x640] sm:$0xff]
    %v496 = vld [vmem:[#allocation6 + $0x648] sm:$0xff]
    %v497 = vld [vmem:[#allocation6 + $0x650] sm:$0xff]
    %v498 = vld [vmem:[#allocation6 + $0x658] sm:$0xff]
    %v499 = vld [vmem:[#allocation6 + $0x660] sm:$0xff]
    %v500 = vld [vmem:[#allocation6 + $0x668] sm:$0xff]
    %v501 = vld [vmem:[#allocation6 + $0x670] sm:$0xff]
    %v502 = vld [vmem:[#allocation6 + $0x678] sm:$0xff]
    %v503 = vld [vmem:[#allocation6 + $0x680] sm:$0xff]
    %v504 = vld [vmem:[#allocation6 + $0x688] sm:$0xff]
    %v505 = vld [vmem:[#allocation6 + $0x690] sm:$0xff]
    %v506 = vld [vmem:[#allocation6 + $0x698] sm:$0xff]
    %v507 = vld [vmem:[#allocation6 + $0x6a0] sm:$0xff]
    %v508 = vld [vmem:[#allocation6 + $0x6a8] sm:$0xff]
    %v509 = vld [vmem:[#allocation6 + $0x6b0] sm:$0xff]
    %v510 = vld [vmem:[#allocation6 + $0x6b8] sm:$0xff]
    %v511 = vld [vmem:[#allocation6 + $0x6c0] sm:$0xff]
    %v512 = vld [vmem:[#allocation6 + $0x6c8] sm:$0xff]
    %v513 = vld [vmem:[#allocation6 + $0x6d0] sm:$0xff]
    %v514 = vld [vmem:[#allocation6 + $0x6d8] sm:$0xff]
    %v515 = vld [vmem:[#allocation6 + $0x6e0] sm:$0xff]
    %v516 = vld [vmem:[#allocation6 + $0x6e8] sm:$0xff]
    %v517 = vld [vmem:[#allocation6 + $0x6f0] sm:$0xff]
    %v518 = vld [vmem:[#allocation6 + $0x6f8] sm:$0xff]
    %v519 = vld [vmem:[#allocation6 + $0x700] sm:$0xff]
    %v520 = vld [vmem:[#allocation6 + $0x708] sm:$0xff]
    %v521 = vld [vmem:[#allocation6 + $0x710] sm:$0xff]
    %v522 = vld [vmem:[#allocation6 + $0x718] sm:$0xff]
    %v523 = vld [vmem:[#allocation6 + $0x720] sm:$0xff]
    %v524 = vld [vmem:[#allocation6 + $0x728] sm:$0xff]
    %v525 = vld [vmem:[#allocation6 + $0x730] sm:$0xff]
    %v526 = vld [vmem:[#allocation6 + $0x738] sm:$0xff]
    %v527 = vld [vmem:[#allocation6 + $0x740] sm:$0xff]
    %v528 = vld [vmem:[#allocation6 + $0x748] sm:$0xff]
    %v529 = vld [vmem:[#allocation6 + $0x750] sm:$0xff]
    %v530 = vld [vmem:[#allocation6 + $0x758] sm:$0xff]
    %v531 = vld [vmem:[#allocation6 + $0x760] sm:$0xff]
    %v532 = vld [vmem:[#allocation6 + $0x768] sm:$0xff]
    %v533 = vld [vmem:[#allocation6 + $0x770] sm:$0xff]
    %v534 = vld [vmem:[#allocation6 + $0x778] sm:$0xff]
    %v535 = vld [vmem:[#allocation6 + $0x780] sm:$0xff]
    %v536 = vld [vmem:[#allocation6 + $0x788] sm:$0xff]
    %v537 = vld [vmem:[#allocation6 + $0x790] sm:$0xff]
    %v538 = vld [vmem:[#allocation6 + $0x798] sm:$0xff]
    %v539 = vld [vmem:[#allocation6 + $0x7a0] sm:$0xff]
    %v540 = vld [vmem:[#allocation6 + $0x7a8] sm:$0xff]
    %v541 = vld [vmem:[#allocation6 + $0x7b0] sm:$0xff]
    %v542 = vld [vmem:[#allocation6 + $0x7b8] sm:$0xff]
    %v543 = vld [vmem:[#allocation6 + $0x7c0] sm:$0xff]
    %v544 = vld [vmem:[#allocation6 + $0x7c8] sm:$0xff]
    %v545 = vld [vmem:[#allocation6 + $0x7d0] sm:$0xff]
    %v546 = vld [vmem:[#allocation6 + $0x7d8] sm:$0xff]
    %v547 = vld [vmem:[#allocation6 + $0x7e0] sm:$0xff]
    %v548 = vld [vmem:[#allocation6 + $0x7e8] sm:$0xff]
    %v549 = vld [vmem:[#allocation6 + $0x7f0] sm:$0xff]
    %v550 = vld [vmem:[#allocation6 + $0x7f8] sm:$0xff]
    %v551 = vld [vmem:[#allocation6 + $0x800] sm:$0xff]
    %v552 = vld [vmem:[#allocation6 + $0x808] sm:$0xff]
    %v553 = vld [vmem:[#allocation6 + $0x810] sm:$0xff]
    %v554 = vld [vmem:[#allocation6 + $0x818] sm:$0xff]
    %v555 = vld [vmem:[#allocation6 + $0x820] sm:$0xff]
    %v556 = vld [vmem:[#allocation6 + $0x828] sm:$0xff]
    %v557 = vld [vmem:[#allocation6 + $0x830] sm:$0xff]
    %v558 = vld [vmem:[#allocation6 + $0x838] sm:$0xff]
    %v559 = vld [vmem:[#allocation6 + $0x840] sm:$0xff]
    %v560 = vld [vmem:[#allocation6 + $0x848] sm:$0xff]
    %v561 = vld [vmem:[#allocation6 + $0x850] sm:$0xff]
    %v562 = vld [vmem:[#allocation6 + $0x858] sm:$0xff]
    %v563 = vld [vmem:[#allocation6 + $0x860] sm:$0xff]
    %v564 = vld [vmem:[#allocation6 + $0x868] sm:$0xff]
    %v565 = vld [vmem:[#allocation6 + $0x870] sm:$0xff]
    %v566 = vld [vmem:[#allocation6 + $0x878] sm:$0xff]
    %v567 = vld [vmem:[#allocation6 + $0x880] sm:$0xff]
    %v568 = vld [vmem:[#allocation6 + $0x888] sm:$0xff]
    %v569 = vld [vmem:[#allocation6 + $0x890] sm:$0xff]
    %v570 = vld [vmem:[#allocation6 + $0x898] sm:$0xff]
    %v571 = vld [vmem:[#allocation6 + $0x8a0] sm:$0xff]
    %v572 = vld [vmem:[#allocation6 + $0x8a8] sm:$0xff]
    %v573 = vld [vmem:[#allocation6 + $0x8b0] sm:$0xff]
    %v574 = vld [vmem:[#allocation6 + $0x8b8] sm:$0xff]
    %v575 = vld [vmem:[#allocation6 + $0x8c0] sm:$0xff]
    %v576 = vld [vmem:[#allocation6 + $0x8c8] sm:$0xff]
    %v577 = vld [vmem:[#allocation6 + $0x8d0] sm:$0xff]
    %v578 = vld [vmem:[#allocation6 + $0x8d8] sm:$0xff]
    %v579 = vld [vmem:[#allocation6 + $0x8e0] sm:$0xff]
    %v580 = vld [vmem:[#allocation6 + $0x8e8] sm:$0xff]
    %v581 = vld [vmem:[#allocation6 + $0x8f0] sm:$0xff]
    %v582 = vld [vmem:[#allocation6 + $0x8f8] sm:$0xff]
    %v584 = vlaneseq
    %v585 = vshrl.u32 %v584, 7
    %v586 = vsub.s32 0, %v585
    %v587 = vrot.slane %v71, %v586
    %v588 = vlaneseq
    %v589 = vshrl.u32 %v588, 7
    %v590 = vsub.s32 1, %v589
    %v591 = vrot.slane %v71, %v590
    %v592 = vlaneseq
    %v593 = vshrl.u32 %v592, 7
    %v594 = vsub.s32 2, %v593
    %v595 = vrot.slane %v71, %v594
    %v596 = vlaneseq
    %v597 = vshrl.u32 %v596, 7
    %v598 = vsub.s32 3, %v597
    %v599 = vrot.slane %v71, %v598
    %v600 = vlaneseq
    %v601 = vshrl.u32 %v600, 7
    %v602 = vsub.s32 4, %v601
    %v603 = vrot.slane %v71, %v602
    %v604 = vlaneseq
    %v605 = vshrl.u32 %v604, 7
    %v606 = vsub.s32 5, %v605
    %v607 = vrot.slane %v71, %v606
    %v902 = vunpack.c.l.b16 %v295
    %v903 = vunpack.c.h.b16 %v295
    %v904 = vunpack.c.l.b16 %v296
    %v905 = vunpack.c.h.b16 %v296
    %v906 = vunpack.c.l.b16 %v297
    %v907 = vunpack.c.h.b16 %v297
    %v908 = vunpack.c.l.b16 %v298
    %v909 = vunpack.c.h.b16 %v298
    %v910 = vunpack.c.l.b16 %v299
    %v911 = vunpack.c.h.b16 %v299
    %v912 = vunpack.c.l.b16 %v300
    %v913 = vunpack.c.h.b16 %v300
    %v914 = vunpack.c.l.b16 %v301
    %v915 = vunpack.c.h.b16 %v301
    %v916 = vunpack.c.l.b16 %v302
    %v917 = vunpack.c.h.b16 %v302
    %v918 = vunpack.c.l.b16 %v303
    %v919 = vunpack.c.h.b16 %v303
    %v920 = vunpack.c.l.b16 %v304
    %v921 = vunpack.c.h.b16 %v304
    %v922 = vunpack.c.l.b16 %v305
    %v923 = vunpack.c.h.b16 %v305
    %v924 = vunpack.c.l.b16 %v306
    %v925 = vunpack.c.h.b16 %v306
    %v926 = vunpack.c.l.b16 %v307
    %v927 = vunpack.c.h.b16 %v307
    %v928 = vunpack.c.l.b16 %v308
    %v929 = vunpack.c.h.b16 %v308
    %v930 = vunpack.c.l.b16 %v309
    %v931 = vunpack.c.h.b16 %v309
    %v932 = vunpack.c.l.b16 %v310
    %v933 = vunpack.c.h.b16 %v310
    %v934 = vunpack.c.l.b16 %v311
    %v935 = vunpack.c.h.b16 %v311
    %v936 = vunpack.c.l.b16 %v312
    %v937 = vunpack.c.h.b16 %v312
    %v938 = vunpack.c.l.b16 %v313
    %v939 = vunpack.c.h.b16 %v313
    %v940 = vunpack.c.l.b16 %v314
    %v941 = vunpack.c.h.b16 %v314
    %v942 = vunpack.c.l.b16 %v315
    %v943 = vunpack.c.h.b16 %v315
    %v944 = vunpack.c.l.b16 %v316
    %v945 = vunpack.c.h.b16 %v316
    %v946 = vunpack.c.l.b16 %v317
    %v947 = vunpack.c.h.b16 %v317
    %v948 = vunpack.c.l.b16 %v318
    %v949 = vunpack.c.h.b16 %v318
    %v950 = vunpack.c.l.b16 %v319
    %v951 = vunpack.c.h.b16 %v319
    %v952 = vunpack.c.l.b16 %v320
    %v953 = vunpack.c.h.b16 %v320
    %v954 = vunpack.c.l.b16 %v321
    %v955 = vunpack.c.h.b16 %v321
    %v956 = vunpack.c.l.b16 %v322
    %v957 = vunpack.c.h.b16 %v322
    %v958 = vunpack.c.l.b16 %v323
    %v959 = vunpack.c.h.b16 %v323
    %v960 = vunpack.c.l.b16 %v324
    %v961 = vunpack.c.h.b16 %v324
    %v962 = vunpack.c.l.b16 %v325
    %v963 = vunpack.c.h.b16 %v325
    %v964 = vunpack.c.l.b16 %v326
    %v965 = vunpack.c.h.b16 %v326
    %v966 = vunpack.c.l.b16 %v327
    %v967 = vunpack.c.h.b16 %v327
    %v968 = vunpack.c.l.b16 %v328
    %v969 = vunpack.c.h.b16 %v328
    %v970 = vunpack.c.l.b16 %v329
    %v971 = vunpack.c.h.b16 %v329
    %v972 = vunpack.c.l.b16 %v330
    %v973 = vunpack.c.h.b16 %v330
    %v974 = vunpack.c.l.b16 %v331
    %v975 = vunpack.c.h.b16 %v331
    %v976 = vunpack.c.l.b16 %v332
    %v977 = vunpack.c.h.b16 %v332
    %v978 = vunpack.c.l.b16 %v333
    %v979 = vunpack.c.h.b16 %v333
    %v980 = vunpack.c.l.b16 %v334
    %v981 = vunpack.c.h.b16 %v334
    %v982 = vunpack.c.l.b16 %v335
    %v983 = vunpack.c.h.b16 %v335
    %v984 = vunpack.c.l.b16 %v336
    %v985 = vunpack.c.h.b16 %v336
    %v986 = vunpack.c.l.b16 %v337
    %v987 = vunpack.c.h.b16 %v337
    %v988 = vunpack.c.l.b16 %v338
    %v989 = vunpack.c.h.b16 %v338
    %v990 = vunpack.c.l.b16 %v339
    %v991 = vunpack.c.h.b16 %v339
    %v992 = vunpack.c.l.b16 %v340
    %v993 = vunpack.c.h.b16 %v340
    %v994 = vunpack.c.l.b16 %v341
    %v995 = vunpack.c.h.b16 %v341
    %v996 = vunpack.c.l.b16 %v342
    %v997 = vunpack.c.h.b16 %v342
    %v998 = vunpack.c.l.b16 %v343
    %v999 = vunpack.c.h.b16 %v343
    %v1000 = vunpack.c.l.b16 %v344
    %v1001 = vunpack.c.h.b16 %v344
    %v1002 = vunpack.c.l.b16 %v345
    %v1003 = vunpack.c.h.b16 %v345
    %v1004 = vunpack.c.l.b16 %v346
    %v1005 = vunpack.c.h.b16 %v346
    %v1006 = vunpack.c.l.b16 %v347
    %v1007 = vunpack.c.h.b16 %v347
    %v1008 = vunpack.c.l.b16 %v348
    %v1009 = vunpack.c.h.b16 %v348
    %v1010 = vunpack.c.l.b16 %v349
    %v1011 = vunpack.c.h.b16 %v349
    %v1012 = vunpack.c.l.b16 %v350
    %v1013 = vunpack.c.h.b16 %v350
    %v1014 = vunpack.c.l.b16 %v351
    %v1015 = vunpack.c.h.b16 %v351
    %v1016 = vunpack.c.l.b16 %v352
    %v1017 = vunpack.c.h.b16 %v352
    %v1018 = vunpack.c.l.b16 %v353
    %v1019 = vunpack.c.h.b16 %v353
    %v1020 = vunpack.c.l.b16 %v354
    %v1021 = vunpack.c.h.b16 %v354
    %v1022 = vunpack.c.l.b16 %v355
    %v1023 = vunpack.c.h.b16 %v355
    %v1024 = vunpack.c.l.b16 %v356
    %v1025 = vunpack.c.h.b16 %v356
    %v1026 = vunpack.c.l.b16 %v357
    %v1027 = vunpack.c.h.b16 %v357
    %v1028 = vunpack.c.l.b16 %v358
    %v1029 = vunpack.c.h.b16 %v358
    %v1030 = vunpack.c.l.b16 %v359
    %v1031 = vunpack.c.h.b16 %v359
    %v1032 = vunpack.c.l.b16 %v360
    %v1033 = vunpack.c.h.b16 %v360
    %v1034 = vunpack.c.l.b16 %v361
    %v1035 = vunpack.c.h.b16 %v361
    %v1036 = vunpack.c.l.b16 %v362
    %v1037 = vunpack.c.h.b16 %v362
    %v1038 = vunpack.c.l.b16 %v363
    %v1039 = vunpack.c.h.b16 %v363
    %v1040 = vunpack.c.l.b16 %v364
    %v1041 = vunpack.c.h.b16 %v364
    %v1042 = vunpack.c.l.b16 %v365
    %v1043 = vunpack.c.h.b16 %v365
    %v1044 = vunpack.c.l.b16 %v366
    %v1045 = vunpack.c.h.b16 %v366
    %v1046 = vunpack.c.l.b16 %v367
    %v1047 = vunpack.c.h.b16 %v367
    %v1048 = vunpack.c.l.b16 %v368
    %v1049 = vunpack.c.h.b16 %v368
    %v1050 = vunpack.c.l.b16 %v369
    %v1051 = vunpack.c.h.b16 %v369
    %v1052 = vunpack.c.l.b16 %v370
    %v1053 = vunpack.c.h.b16 %v370
    %v1054 = vunpack.c.l.b16 %v371
    %v1055 = vunpack.c.h.b16 %v371
    %v1056 = vunpack.c.l.b16 %v372
    %v1057 = vunpack.c.h.b16 %v372
    %v1058 = vunpack.c.l.b16 %v373
    %v1059 = vunpack.c.h.b16 %v373
    %v1060 = vunpack.c.l.b16 %v374
    %v1061 = vunpack.c.h.b16 %v374
    %v1062 = vunpack.c.l.b16 %v375
    %v1063 = vunpack.c.h.b16 %v375
    %v1064 = vunpack.c.l.b16 %v376
    %v1065 = vunpack.c.h.b16 %v376
    %v1066 = vunpack.c.l.b16 %v377
    %v1067 = vunpack.c.h.b16 %v377
    %v1068 = vunpack.c.l.b16 %v378
    %v1069 = vunpack.c.h.b16 %v378
    %v1070 = vunpack.c.l.b16 %v379
    %v1071 = vunpack.c.h.b16 %v379
    %v1072 = vunpack.c.l.b16 %v380
    %v1073 = vunpack.c.h.b16 %v380
    %v1074 = vunpack.c.l.b16 %v381
    %v1075 = vunpack.c.h.b16 %v381
    %v1076 = vunpack.c.l.b16 %v382
    %v1077 = vunpack.c.h.b16 %v382
    %v1078 = vunpack.c.l.b16 %v383
    %v1079 = vunpack.c.h.b16 %v383
    %v1080 = vunpack.c.l.b16 %v384
    %v1081 = vunpack.c.h.b16 %v384
    %v1082 = vunpack.c.l.b16 %v385
    %v1083 = vunpack.c.h.b16 %v385
    %v1084 = vunpack.c.l.b16 %v386
    %v1085 = vunpack.c.h.b16 %v386
    %v1086 = vunpack.c.l.b16 %v387
    %v1087 = vunpack.c.h.b16 %v387
    %v1088 = vunpack.c.l.b16 %v388
    %v1089 = vunpack.c.h.b16 %v388
    %v1090 = vunpack.c.l.b16 %v389
    %v1091 = vunpack.c.h.b16 %v389
    %v1092 = vunpack.c.l.b16 %v390
    %v1093 = vunpack.c.h.b16 %v390
    %v1094 = vunpack.c.l.b16 %v391
    %v1095 = vunpack.c.h.b16 %v391
    %v1096 = vunpack.c.l.b16 %v392
    %v1097 = vunpack.c.h.b16 %v392
    %v1098 = vunpack.c.l.b16 %v393
    %v1099 = vunpack.c.h.b16 %v393
    %v1100 = vunpack.c.l.b16 %v394
    %v1101 = vunpack.c.h.b16 %v394
    %v1102 = vunpack.c.l.b16 %v395
    %v1103 = vunpack.c.h.b16 %v395
    %v1104 = vunpack.c.l.b16 %v396
    %v1105 = vunpack.c.h.b16 %v396
    %v1106 = vunpack.c.l.b16 %v397
    %v1107 = vunpack.c.h.b16 %v397
    %v1108 = vunpack.c.l.b16 %v398
    %v1109 = vunpack.c.h.b16 %v398
    %v1110 = vunpack.c.l.b16 %v399
    %v1111 = vunpack.c.h.b16 %v399
    %v1112 = vunpack.c.l.b16 %v400
    %v1113 = vunpack.c.h.b16 %v400
    %v1114 = vunpack.c.l.b16 %v401
    %v1115 = vunpack.c.h.b16 %v401
    %v1116 = vunpack.c.l.b16 %v402
    %v1117 = vunpack.c.h.b16 %v402
    %v1118 = vunpack.c.l.b16 %v403
    %v1119 = vunpack.c.h.b16 %v403
    %v1120 = vunpack.c.l.b16 %v404
    %v1121 = vunpack.c.h.b16 %v404
    %v1122 = vunpack.c.l.b16 %v405
    %v1123 = vunpack.c.h.b16 %v405
    %v1124 = vunpack.c.l.b16 %v406
    %v1125 = vunpack.c.h.b16 %v406
    %v1126 = vunpack.c.l.b16 %v407
    %v1127 = vunpack.c.h.b16 %v407
    %v1128 = vunpack.c.l.b16 %v408
    %v1129 = vunpack.c.h.b16 %v408
    %v1130 = vunpack.c.l.b16 %v409
    %v1131 = vunpack.c.h.b16 %v409
    %v1132 = vunpack.c.l.b16 %v410
    %v1133 = vunpack.c.h.b16 %v410
    %v1134 = vunpack.c.l.b16 %v411
    %v1135 = vunpack.c.h.b16 %v411
    %v1136 = vunpack.c.l.b16 %v412
    %v1137 = vunpack.c.h.b16 %v412
    %v1138 = vunpack.c.l.b16 %v413
    %v1139 = vunpack.c.h.b16 %v413
    %v1140 = vunpack.c.l.b16 %v414
    %v1141 = vunpack.c.h.b16 %v414
    %v1142 = vunpack.c.l.b16 %v415
    %v1143 = vunpack.c.h.b16 %v415
    %v1144 = vunpack.c.l.b16 %v416
    %v1145 = vunpack.c.h.b16 %v416
    %v1146 = vunpack.c.l.b16 %v417
    %v1147 = vunpack.c.h.b16 %v417
    %v1148 = vunpack.c.l.b16 %v418
    %v1149 = vunpack.c.h.b16 %v418
    %v1150 = vunpack.c.l.b16 %v419
    %v1151 = vunpack.c.h.b16 %v419
    %v1152 = vunpack.c.l.b16 %v420
    %v1153 = vunpack.c.h.b16 %v420
    %v1154 = vunpack.c.l.b16 %v421
    %v1155 = vunpack.c.h.b16 %v421
    %v1156 = vunpack.c.l.b16 %v422
    %v1157 = vunpack.c.h.b16 %v422
    %v1158 = vunpack.c.l.b16 %v423
    %v1159 = vunpack.c.h.b16 %v423
    %v1160 = vunpack.c.l.b16 %v424
    %v1161 = vunpack.c.h.b16 %v424
    %v1162 = vunpack.c.l.b16 %v425
    %v1163 = vunpack.c.h.b16 %v425
    %v1164 = vunpack.c.l.b16 %v426
    %v1165 = vunpack.c.h.b16 %v426
    %v1166 = vunpack.c.l.b16 %v427
    %v1167 = vunpack.c.h.b16 %v427
    %v1168 = vunpack.c.l.b16 %v428
    %v1169 = vunpack.c.h.b16 %v428
    %v1170 = vunpack.c.l.b16 %v429
    %v1171 = vunpack.c.h.b16 %v429
    %v1172 = vunpack.c.l.b16 %v430
    %v1173 = vunpack.c.h.b16 %v430
    %v1174 = vunpack.c.l.b16 %v431
    %v1175 = vunpack.c.h.b16 %v431
    %v1176 = vunpack.c.l.b16 %v432
    %v1177 = vunpack.c.h.b16 %v432
    %v1178 = vunpack.c.l.b16 %v433
    %v1179 = vunpack.c.h.b16 %v433
    %v1180 = vunpack.c.l.b16 %v434
    %v1181 = vunpack.c.h.b16 %v434
    %v1182 = vunpack.c.l.b16 %v435
    %v1183 = vunpack.c.h.b16 %v435
    %v1184 = vunpack.c.l.b16 %v436
    %v1185 = vunpack.c.h.b16 %v436
    %v1186 = vunpack.c.l.b16 %v437
    %v1187 = vunpack.c.h.b16 %v437
    %v1188 = vunpack.c.l.b16 %v438
    %v1189 = vunpack.c.h.b16 %v438
    %v1190 = vunpack.c.l.b16 %v439
    %v1191 = vunpack.c.h.b16 %v439
    %v1192 = vunpack.c.l.b16 %v440
    %v1193 = vunpack.c.h.b16 %v440
    %v1194 = vunpack.c.l.b16 %v441
    %v1195 = vunpack.c.h.b16 %v441
    %v1196 = vunpack.c.l.b16 %v442
    %v1197 = vunpack.c.h.b16 %v442
    %v1198 = vunpack.c.l.b16 %v443
    %v1199 = vunpack.c.h.b16 %v443
    %v1200 = vunpack.c.l.b16 %v444
    %v1201 = vunpack.c.h.b16 %v444
    %v1202 = vunpack.c.l.b16 %v445
    %v1203 = vunpack.c.h.b16 %v445
    %v1204 = vunpack.c.l.b16 %v446
    %v1205 = vunpack.c.h.b16 %v446
    %v1206 = vunpack.c.l.b16 %v447
    %v1207 = vunpack.c.h.b16 %v447
    %v1208 = vunpack.c.l.b16 %v448
    %v1209 = vunpack.c.h.b16 %v448
    %v1210 = vunpack.c.l.b16 %v449
    %v1211 = vunpack.c.h.b16 %v449
    %v1212 = vunpack.c.l.b16 %v450
    %v1213 = vunpack.c.h.b16 %v450
    %v1214 = vunpack.c.l.b16 %v451
    %v1215 = vunpack.c.h.b16 %v451
    %v1216 = vunpack.c.l.b16 %v452
    %v1217 = vunpack.c.h.b16 %v452
    %v1218 = vunpack.c.l.b16 %v453
    %v1219 = vunpack.c.h.b16 %v453
    %v1220 = vunpack.c.l.b16 %v454
    %v1221 = vunpack.c.h.b16 %v454
    %v1222 = vunpack.c.l.b16 %v455
    %v1223 = vunpack.c.h.b16 %v455
    %v1224 = vunpack.c.l.b16 %v456
    %v1225 = vunpack.c.h.b16 %v456
    %v1226 = vunpack.c.l.b16 %v457
    %v1227 = vunpack.c.h.b16 %v457
    %v1228 = vunpack.c.l.b16 %v458
    %v1229 = vunpack.c.h.b16 %v458
    %v1230 = vunpack.c.l.b16 %v459
    %v1231 = vunpack.c.h.b16 %v459
    %v1232 = vunpack.c.l.b16 %v460
    %v1233 = vunpack.c.h.b16 %v460
    %v1234 = vunpack.c.l.b16 %v461
    %v1235 = vunpack.c.h.b16 %v461
    %v1236 = vunpack.c.l.b16 %v462
    %v1237 = vunpack.c.h.b16 %v462
    %v1238 = vunpack.c.l.b16 %v463
    %v1239 = vunpack.c.h.b16 %v463
    %v1240 = vunpack.c.l.b16 %v464
    %v1241 = vunpack.c.h.b16 %v464
    %v1242 = vunpack.c.l.b16 %v465
    %v1243 = vunpack.c.h.b16 %v465
    %v1244 = vunpack.c.l.b16 %v466
    %v1245 = vunpack.c.h.b16 %v466
    %v1246 = vunpack.c.l.b16 %v467
    %v1247 = vunpack.c.h.b16 %v467
    %v1248 = vunpack.c.l.b16 %v468
    %v1249 = vunpack.c.h.b16 %v468
    %v1250 = vunpack.c.l.b16 %v469
    %v1251 = vunpack.c.h.b16 %v469
    %v1252 = vunpack.c.l.b16 %v470
    %v1253 = vunpack.c.h.b16 %v470
    %v1254 = vunpack.c.l.b16 %v471
    %v1255 = vunpack.c.h.b16 %v471
    %v1256 = vunpack.c.l.b16 %v472
    %v1257 = vunpack.c.h.b16 %v472
    %v1258 = vunpack.c.l.b16 %v473
    %v1259 = vunpack.c.h.b16 %v473
    %v1260 = vunpack.c.l.b16 %v474
    %v1261 = vunpack.c.h.b16 %v474
    %v1262 = vunpack.c.l.b16 %v475
    %v1263 = vunpack.c.h.b16 %v475
    %v1264 = vunpack.c.l.b16 %v476
    %v1265 = vunpack.c.h.b16 %v476
    %v1266 = vunpack.c.l.b16 %v477
    %v1267 = vunpack.c.h.b16 %v477
    %v1268 = vunpack.c.l.b16 %v478
    %v1269 = vunpack.c.h.b16 %v478
    %v1270 = vunpack.c.l.b16 %v479
    %v1271 = vunpack.c.h.b16 %v479
    %v1272 = vunpack.c.l.b16 %v480
    %v1273 = vunpack.c.h.b16 %v480
    %v1274 = vunpack.c.l.b16 %v481
    %v1275 = vunpack.c.h.b16 %v481
    %v1276 = vunpack.c.l.b16 %v482
    %v1277 = vunpack.c.h.b16 %v482
    %v1278 = vunpack.c.l.b16 %v483
    %v1279 = vunpack.c.h.b16 %v483
    %v1280 = vunpack.c.l.b16 %v484
    %v1281 = vunpack.c.h.b16 %v484
    %v1282 = vunpack.c.l.b16 %v485
    %v1283 = vunpack.c.h.b16 %v485
    %v1284 = vunpack.c.l.b16 %v486
    %v1285 = vunpack.c.h.b16 %v486
    %v1286 = vunpack.c.l.b16 %v487
    %v1287 = vunpack.c.h.b16 %v487
    %v1288 = vunpack.c.l.b16 %v488
    %v1289 = vunpack.c.h.b16 %v488
    %v1290 = vunpack.c.l.b16 %v489
    %v1291 = vunpack.c.h.b16 %v489
    %v1292 = vunpack.c.l.b16 %v490
    %v1293 = vunpack.c.h.b16 %v490
    %v1294 = vunpack.c.l.b16 %v491
    %v1295 = vunpack.c.h.b16 %v491
    %v1296 = vunpack.c.l.b16 %v492
    %v1297 = vunpack.c.h.b16 %v492
    %v1298 = vunpack.c.l.b16 %v493
    %v1299 = vunpack.c.h.b16 %v493
    %v1300 = vunpack.c.l.b16 %v494
    %v1301 = vunpack.c.h.b16 %v494
    %v1302 = vunpack.c.l.b16 %v495
    %v1303 = vunpack.c.h.b16 %v495
    %v1304 = vunpack.c.l.b16 %v496
    %v1305 = vunpack.c.h.b16 %v496
    %v1306 = vunpack.c.l.b16 %v497
    %v1307 = vunpack.c.h.b16 %v497
    %v1308 = vunpack.c.l.b16 %v498
    %v1309 = vunpack.c.h.b16 %v498
    %v1310 = vunpack.c.l.b16 %v499
    %v1311 = vunpack.c.h.b16 %v499
    %v1312 = vunpack.c.l.b16 %v500
    %v1313 = vunpack.c.h.b16 %v500
    %v1314 = vunpack.c.l.b16 %v501
    %v1315 = vunpack.c.h.b16 %v501
    %v1316 = vunpack.c.l.b16 %v502
    %v1317 = vunpack.c.h.b16 %v502
    %v1318 = vunpack.c.l.b16 %v503
    %v1319 = vunpack.c.h.b16 %v503
    %v1320 = vunpack.c.l.b16 %v504
    %v1321 = vunpack.c.h.b16 %v504
    %v1322 = vunpack.c.l.b16 %v505
    %v1323 = vunpack.c.h.b16 %v505
    %v1324 = vunpack.c.l.b16 %v506
    %v1325 = vunpack.c.h.b16 %v506
    %v1326 = vunpack.c.l.b16 %v507
    %v1327 = vunpack.c.h.b16 %v507
    %v1328 = vunpack.c.l.b16 %v508
    %v1329 = vunpack.c.h.b16 %v508
    %v1330 = vunpack.c.l.b16 %v509
    %v1331 = vunpack.c.h.b16 %v509
    %v1332 = vunpack.c.l.b16 %v510
    %v1333 = vunpack.c.h.b16 %v510
    %v1334 = vunpack.c.l.b16 %v511
    %v1335 = vunpack.c.h.b16 %v511
    %v1336 = vunpack.c.l.b16 %v512
    %v1337 = vunpack.c.h.b16 %v512
    %v1338 = vunpack.c.l.b16 %v513
    %v1339 = vunpack.c.h.b16 %v513
    %v1340 = vunpack.c.l.b16 %v514
    %v1341 = vunpack.c.h.b16 %v514
    %v1342 = vunpack.c.l.b16 %v515
    %v1343 = vunpack.c.h.b16 %v515
    %v1344 = vunpack.c.l.b16 %v516
    %v1345 = vunpack.c.h.b16 %v516
    %v1346 = vunpack.c.l.b16 %v517
    %v1347 = vunpack.c.h.b16 %v517
    %v1348 = vunpack.c.l.b16 %v518
    %v1349 = vunpack.c.h.b16 %v518
    %v1350 = vunpack.c.l.b16 %v519
    %v1351 = vunpack.c.h.b16 %v519
    %v1352 = vunpack.c.l.b16 %v520
    %v1353 = vunpack.c.h.b16 %v520
    %v1354 = vunpack.c.l.b16 %v521
    %v1355 = vunpack.c.h.b16 %v521
    %v1356 = vunpack.c.l.b16 %v522
    %v1357 = vunpack.c.h.b16 %v522
    %v1358 = vunpack.c.l.b16 %v523
    %v1359 = vunpack.c.h.b16 %v523
    %v1360 = vunpack.c.l.b16 %v524
    %v1361 = vunpack.c.h.b16 %v524
    %v1362 = vunpack.c.l.b16 %v525
    %v1363 = vunpack.c.h.b16 %v525
    %v1364 = vunpack.c.l.b16 %v526
    %v1365 = vunpack.c.h.b16 %v526
    %v1366 = vunpack.c.l.b16 %v527
    %v1367 = vunpack.c.h.b16 %v527
    %v1368 = vunpack.c.l.b16 %v528
    %v1369 = vunpack.c.h.b16 %v528
    %v1370 = vunpack.c.l.b16 %v529
    %v1371 = vunpack.c.h.b16 %v529
    %v1372 = vunpack.c.l.b16 %v530
    %v1373 = vunpack.c.h.b16 %v530
    %v1374 = vunpack.c.l.b16 %v531
    %v1375 = vunpack.c.h.b16 %v531
    %v1376 = vunpack.c.l.b16 %v532
    %v1377 = vunpack.c.h.b16 %v532
    %v1378 = vunpack.c.l.b16 %v533
    %v1379 = vunpack.c.h.b16 %v533
    %v1380 = vunpack.c.l.b16 %v534
    %v1381 = vunpack.c.h.b16 %v534
    %v1382 = vunpack.c.l.b16 %v535
    %v1383 = vunpack.c.h.b16 %v535
    %v1384 = vunpack.c.l.b16 %v536
    %v1385 = vunpack.c.h.b16 %v536
    %v1386 = vunpack.c.l.b16 %v537
    %v1387 = vunpack.c.h.b16 %v537
    %v1388 = vunpack.c.l.b16 %v538
    %v1389 = vunpack.c.h.b16 %v538
    %v1390 = vunpack.c.l.b16 %v539
    %v1391 = vunpack.c.h.b16 %v539
    %v1392 = vunpack.c.l.b16 %v540
    %v1393 = vunpack.c.h.b16 %v540
    %v1394 = vunpack.c.l.b16 %v541
    %v1395 = vunpack.c.h.b16 %v541
    %v1396 = vunpack.c.l.b16 %v542
    %v1397 = vunpack.c.h.b16 %v542
    %v1398 = vunpack.c.l.b16 %v543
    %v1399 = vunpack.c.h.b16 %v543
    %v1400 = vunpack.c.l.b16 %v544
    %v1401 = vunpack.c.h.b16 %v544
    %v1402 = vunpack.c.l.b16 %v545
    %v1403 = vunpack.c.h.b16 %v545
    %v1404 = vunpack.c.l.b16 %v546
    %v1405 = vunpack.c.h.b16 %v546
    %v1406 = vunpack.c.l.b16 %v547
    %v1407 = vunpack.c.h.b16 %v547
    %v1408 = vunpack.c.l.b16 %v548
    %v1409 = vunpack.c.h.b16 %v548
    %v1410 = vunpack.c.l.b16 %v549
    %v1411 = vunpack.c.h.b16 %v549
    %v1412 = vunpack.c.l.b16 %v550
    %v1413 = vunpack.c.h.b16 %v550
    %v1414 = vunpack.c.l.b16 %v551
    %v1415 = vunpack.c.h.b16 %v551
    %v1416 = vunpack.c.l.b16 %v552
    %v1417 = vunpack.c.h.b16 %v552
    %v1418 = vunpack.c.l.b16 %v553
    %v1419 = vunpack.c.h.b16 %v553
    %v1420 = vunpack.c.l.b16 %v554
    %v1421 = vunpack.c.h.b16 %v554
    %v1422 = vunpack.c.l.b16 %v555
    %v1423 = vunpack.c.h.b16 %v555
    %v1424 = vunpack.c.l.b16 %v556
    %v1425 = vunpack.c.h.b16 %v556
    %v1426 = vunpack.c.l.b16 %v557
    %v1427 = vunpack.c.h.b16 %v557
    %v1428 = vunpack.c.l.b16 %v558
    %v1429 = vunpack.c.h.b16 %v558
    %v1430 = vunpack.c.l.b16 %v559
    %v1431 = vunpack.c.h.b16 %v559
    %v1432 = vunpack.c.l.b16 %v560
    %v1433 = vunpack.c.h.b16 %v560
    %v1434 = vunpack.c.l.b16 %v561
    %v1435 = vunpack.c.h.b16 %v561
    %v1436 = vunpack.c.l.b16 %v562
    %v1437 = vunpack.c.h.b16 %v562
    %v1438 = vunpack.c.l.b16 %v563
    %v1439 = vunpack.c.h.b16 %v563
    %v1440 = vunpack.c.l.b16 %v564
    %v1441 = vunpack.c.h.b16 %v564
    %v1442 = vunpack.c.l.b16 %v565
    %v1443 = vunpack.c.h.b16 %v565
    %v1444 = vunpack.c.l.b16 %v566
    %v1445 = vunpack.c.h.b16 %v566
    %v1446 = vunpack.c.l.b16 %v567
    %v1447 = vunpack.c.h.b16 %v567
    %v1448 = vunpack.c.l.b16 %v568
    %v1449 = vunpack.c.h.b16 %v568
    %v1450 = vunpack.c.l.b16 %v569
    %v1451 = vunpack.c.h.b16 %v569
    %v1452 = vunpack.c.l.b16 %v570
    %v1453 = vunpack.c.h.b16 %v570
    %v1454 = vunpack.c.l.b16 %v571
    %v1455 = vunpack.c.h.b16 %v571
    %v1456 = vunpack.c.l.b16 %v572
    %v1457 = vunpack.c.h.b16 %v572
    %v1458 = vunpack.c.l.b16 %v573
    %v1459 = vunpack.c.h.b16 %v573
    %v1460 = vunpack.c.l.b16 %v574
    %v1461 = vunpack.c.h.b16 %v574
    %v1462 = vunpack.c.l.b16 %v575
    %v1463 = vunpack.c.h.b16 %v575
    %v1464 = vunpack.c.l.b16 %v576
    %v1465 = vunpack.c.h.b16 %v576
    %v1466 = vunpack.c.l.b16 %v577
    %v1467 = vunpack.c.h.b16 %v577
    %v1468 = vunpack.c.l.b16 %v578
    %v1469 = vunpack.c.h.b16 %v578
    %v1470 = vunpack.c.l.b16 %v579
    %v1471 = vunpack.c.h.b16 %v579
    %v1472 = vunpack.c.l.b16 %v580
    %v1473 = vunpack.c.h.b16 %v580
    %v1474 = vunpack.c.l.b16 %v581
    %v1475 = vunpack.c.h.b16 %v581
    %v1476 = vunpack.c.l.b16 %v582
    %v1477 = vunpack.c.h.b16 %v582
    %v1478 = vpack.c.b16 %v908, %v902
    %v1479 = vpack.c.b16 %v909, %v903
    %v1480 = vpack.c.b16 %v910, %v904
    %v1481 = vpack.c.b16 %v911, %v905
    %v1482 = vpack.c.b16 %v912, %v906
    %v1483 = vpack.c.b16 %v913, %v907
    %v1484 = vpack.c.b16 %v920, %v914
    %v1485 = vpack.c.b16 %v921, %v915
    %v1486 = vpack.c.b16 %v922, %v916
    %v1487 = vpack.c.b16 %v923, %v917
    %v1488 = vpack.c.b16 %v924, %v918
    %v1489 = vpack.c.b16 %v925, %v919
    %v1490 = vpack.c.b16 %v932, %v926
    %v1491 = vpack.c.b16 %v933, %v927
    %v1492 = vpack.c.b16 %v934, %v928
    %v1493 = vpack.c.b16 %v935, %v929
    %v1494 = vpack.c.b16 %v936, %v930
    %v1495 = vpack.c.b16 %v937, %v931
    %v1496 = vpack.c.b16 %v944, %v938
    %v1497 = vpack.c.b16 %v945, %v939
    %v1498 = vpack.c.b16 %v946, %v940
    %v1499 = vpack.c.b16 %v947, %v941
    %v1500 = vpack.c.b16 %v948, %v942
    %v1501 = vpack.c.b16 %v949, %v943
    %v1502 = vpack.c.b16 %v956, %v950
    %v1503 = vpack.c.b16 %v957, %v951
    %v1504 = vpack.c.b16 %v958, %v952
    %v1505 = vpack.c.b16 %v959, %v953
    %v1506 = vpack.c.b16 %v960, %v954
    %v1507 = vpack.c.b16 %v961, %v955
    %v1508 = vpack.c.b16 %v968, %v962
    %v1509 = vpack.c.b16 %v969, %v963
    %v1510 = vpack.c.b16 %v970, %v964
    %v1511 = vpack.c.b16 %v971, %v965
    %v1512 = vpack.c.b16 %v972, %v966
    %v1513 = vpack.c.b16 %v973, %v967
    %v1514 = vpack.c.b16 %v980, %v974
    %v1515 = vpack.c.b16 %v981, %v975
    %v1516 = vpack.c.b16 %v982, %v976
    %v1517 = vpack.c.b16 %v983, %v977
    %v1518 = vpack.c.b16 %v984, %v978
    %v1519 = vpack.c.b16 %v985, %v979
    %v1520 = vpack.c.b16 %v992, %v986
    %v1521 = vpack.c.b16 %v993, %v987
    %v1522 = vpack.c.b16 %v994, %v988
    %v1523 = vpack.c.b16 %v995, %v989
    %v1524 = vpack.c.b16 %v996, %v990
    %v1525 = vpack.c.b16 %v997, %v991
    %v1526 = vpack.c.b16 %v1004, %v998
    %v1527 = vpack.c.b16 %v1005, %v999
    %v1528 = vpack.c.b16 %v1006, %v1000
    %v1529 = vpack.c.b16 %v1007, %v1001
    %v1530 = vpack.c.b16 %v1008, %v1002
    %v1531 = vpack.c.b16 %v1009, %v1003
    %v1532 = vpack.c.b16 %v1016, %v1010
    %v1533 = vpack.c.b16 %v1017, %v1011
    %v1534 = vpack.c.b16 %v1018, %v1012
    %v1535 = vpack.c.b16 %v1019, %v1013
    %v1536 = vpack.c.b16 %v1020, %v1014
    %v1537 = vpack.c.b16 %v1021, %v1015
    %v1538 = vpack.c.b16 %v1028, %v1022
    %v1539 = vpack.c.b16 %v1029, %v1023
    %v1540 = vpack.c.b16 %v1030, %v1024
    %v1541 = vpack.c.b16 %v1031, %v1025
    %v1542 = vpack.c.b16 %v1032, %v1026
    %v1543 = vpack.c.b16 %v1033, %v1027
    %v1544 = vpack.c.b16 %v1040, %v1034
    %v1545 = vpack.c.b16 %v1041, %v1035
    %v1546 = vpack.c.b16 %v1042, %v1036
    %v1547 = vpack.c.b16 %v1043, %v1037
    %v1548 = vpack.c.b16 %v1044, %v1038
    %v1549 = vpack.c.b16 %v1045, %v1039
    %v1550 = vpack.c.b16 %v1052, %v1046
    %v1551 = vpack.c.b16 %v1053, %v1047
    %v1552 = vpack.c.b16 %v1054, %v1048
    %v1553 = vpack.c.b16 %v1055, %v1049
    %v1554 = vpack.c.b16 %v1056, %v1050
    %v1555 = vpack.c.b16 %v1057, %v1051
    %v1556 = vpack.c.b16 %v1064, %v1058
    %v1557 = vpack.c.b16 %v1065, %v1059
    %v1558 = vpack.c.b16 %v1066, %v1060
    %v1559 = vpack.c.b16 %v1067, %v1061
    %v1560 = vpack.c.b16 %v1068, %v1062
    %v1561 = vpack.c.b16 %v1069, %v1063
    %v1562 = vpack.c.b16 %v1076, %v1070
    %v1563 = vpack.c.b16 %v1077, %v1071
    %v1564 = vpack.c.b16 %v1078, %v1072
    %v1565 = vpack.c.b16 %v1079, %v1073
    %v1566 = vpack.c.b16 %v1080, %v1074
    %v1567 = vpack.c.b16 %v1081, %v1075
    %v1568 = vpack.c.b16 %v1088, %v1082
    %v1569 = vpack.c.b16 %v1089, %v1083
    %v1570 = vpack.c.b16 %v1090, %v1084
    %v1571 = vpack.c.b16 %v1091, %v1085
    %v1572 = vpack.c.b16 %v1092, %v1086
    %v1573 = vpack.c.b16 %v1093, %v1087
    %v1574 = vpack.c.b16 %v1100, %v1094
    %v1575 = vpack.c.b16 %v1101, %v1095
    %v1576 = vpack.c.b16 %v1102, %v1096
    %v1577 = vpack.c.b16 %v1103, %v1097
    %v1578 = vpack.c.b16 %v1104, %v1098
    %v1579 = vpack.c.b16 %v1105, %v1099
    %v1580 = vpack.c.b16 %v1112, %v1106
    %v1581 = vpack.c.b16 %v1113, %v1107
    %v1582 = vpack.c.b16 %v1114, %v1108
    %v1583 = vpack.c.b16 %v1115, %v1109
    %v1584 = vpack.c.b16 %v1116, %v1110
    %v1585 = vpack.c.b16 %v1117, %v1111
    %v1586 = vpack.c.b16 %v1124, %v1118
    %v1587 = vpack.c.b16 %v1125, %v1119
    %v1588 = vpack.c.b16 %v1126, %v1120
    %v1589 = vpack.c.b16 %v1127, %v1121
    %v1590 = vpack.c.b16 %v1128, %v1122
    %v1591 = vpack.c.b16 %v1129, %v1123
    %v1592 = vpack.c.b16 %v1136, %v1130
    %v1593 = vpack.c.b16 %v1137, %v1131
    %v1594 = vpack.c.b16 %v1138, %v1132
    %v1595 = vpack.c.b16 %v1139, %v1133
    %v1596 = vpack.c.b16 %v1140, %v1134
    %v1597 = vpack.c.b16 %v1141, %v1135
    %v1598 = vpack.c.b16 %v1148, %v1142
    %v1599 = vpack.c.b16 %v1149, %v1143
    %v1600 = vpack.c.b16 %v1150, %v1144
    %v1601 = vpack.c.b16 %v1151, %v1145
    %v1602 = vpack.c.b16 %v1152, %v1146
    %v1603 = vpack.c.b16 %v1153, %v1147
    %v1604 = vpack.c.b16 %v1160, %v1154
    %v1605 = vpack.c.b16 %v1161, %v1155
    %v1606 = vpack.c.b16 %v1162, %v1156
    %v1607 = vpack.c.b16 %v1163, %v1157
    %v1608 = vpack.c.b16 %v1164, %v1158
    %v1609 = vpack.c.b16 %v1165, %v1159
    %v1610 = vpack.c.b16 %v1172, %v1166
    %v1611 = vpack.c.b16 %v1173, %v1167
    %v1612 = vpack.c.b16 %v1174, %v1168
    %v1613 = vpack.c.b16 %v1175, %v1169
    %v1614 = vpack.c.b16 %v1176, %v1170
    %v1615 = vpack.c.b16 %v1177, %v1171
    %v1616 = vpack.c.b16 %v1184, %v1178
    %v1617 = vpack.c.b16 %v1185, %v1179
    %v1618 = vpack.c.b16 %v1186, %v1180
    %v1619 = vpack.c.b16 %v1187, %v1181
    %v1620 = vpack.c.b16 %v1188, %v1182
    %v1621 = vpack.c.b16 %v1189, %v1183
    %v1622 = vpack.c.b16 %v1196, %v1190
    %v1623 = vpack.c.b16 %v1197, %v1191
    %v1624 = vpack.c.b16 %v1198, %v1192
    %v1625 = vpack.c.b16 %v1199, %v1193
    %v1626 = vpack.c.b16 %v1200, %v1194
    %v1627 = vpack.c.b16 %v1201, %v1195
    %v1628 = vpack.c.b16 %v1208, %v1202
    %v1629 = vpack.c.b16 %v1209, %v1203
    %v1630 = vpack.c.b16 %v1210, %v1204
    %v1631 = vpack.c.b16 %v1211, %v1205
    %v1632 = vpack.c.b16 %v1212, %v1206
    %v1633 = vpack.c.b16 %v1213, %v1207
    %v1634 = vpack.c.b16 %v1220, %v1214
    %v1635 = vpack.c.b16 %v1221, %v1215
    %v1636 = vpack.c.b16 %v1222, %v1216
    %v1637 = vpack.c.b16 %v1223, %v1217
    %v1638 = vpack.c.b16 %v1224, %v1218
    %v1639 = vpack.c.b16 %v1225, %v1219
    %v1640 = vpack.c.b16 %v1232, %v1226
    %v1641 = vpack.c.b16 %v1233, %v1227
    %v1642 = vpack.c.b16 %v1234, %v1228
    %v1643 = vpack.c.b16 %v1235, %v1229
    %v1644 = vpack.c.b16 %v1236, %v1230
    %v1645 = vpack.c.b16 %v1237, %v1231
    %v1646 = vpack.c.b16 %v1244, %v1238
    %v1647 = vpack.c.b16 %v1245, %v1239
    %v1648 = vpack.c.b16 %v1246, %v1240
    %v1649 = vpack.c.b16 %v1247, %v1241
    %v1650 = vpack.c.b16 %v1248, %v1242
    %v1651 = vpack.c.b16 %v1249, %v1243
    %v1652 = vpack.c.b16 %v1256, %v1250
    %v1653 = vpack.c.b16 %v1257, %v1251
    %v1654 = vpack.c.b16 %v1258, %v1252
    %v1655 = vpack.c.b16 %v1259, %v1253
    %v1656 = vpack.c.b16 %v1260, %v1254
    %v1657 = vpack.c.b16 %v1261, %v1255
    %v1658 = vpack.c.b16 %v1268, %v1262
    %v1659 = vpack.c.b16 %v1269, %v1263
    %v1660 = vpack.c.b16 %v1270, %v1264
    %v1661 = vpack.c.b16 %v1271, %v1265
    %v1662 = vpack.c.b16 %v1272, %v1266
    %v1663 = vpack.c.b16 %v1273, %v1267
    %v1664 = vpack.c.b16 %v1280, %v1274
    %v1665 = vpack.c.b16 %v1281, %v1275
    %v1666 = vpack.c.b16 %v1282, %v1276
    %v1667 = vpack.c.b16 %v1283, %v1277
    %v1668 = vpack.c.b16 %v1284, %v1278
    %v1669 = vpack.c.b16 %v1285, %v1279
    %v1670 = vpack.c.b16 %v1292, %v1286
    %v1671 = vpack.c.b16 %v1293, %v1287
    %v1672 = vpack.c.b16 %v1294, %v1288
    %v1673 = vpack.c.b16 %v1295, %v1289
    %v1674 = vpack.c.b16 %v1296, %v1290
    %v1675 = vpack.c.b16 %v1297, %v1291
    %v1676 = vpack.c.b16 %v1304, %v1298
    %v1677 = vpack.c.b16 %v1305, %v1299
    %v1678 = vpack.c.b16 %v1306, %v1300
    %v1679 = vpack.c.b16 %v1307, %v1301
    %v1680 = vpack.c.b16 %v1308, %v1302
    %v1681 = vpack.c.b16 %v1309, %v1303
    %v1682 = vpack.c.b16 %v1316, %v1310
    %v1683 = vpack.c.b16 %v1317, %v1311
    %v1684 = vpack.c.b16 %v1318, %v1312
    %v1685 = vpack.c.b16 %v1319, %v1313
    %v1686 = vpack.c.b16 %v1320, %v1314
    %v1687 = vpack.c.b16 %v1321, %v1315
    %v1688 = vpack.c.b16 %v1328, %v1322
    %v1689 = vpack.c.b16 %v1329, %v1323
    %v1690 = vpack.c.b16 %v1330, %v1324
    %v1691 = vpack.c.b16 %v1331, %v1325
    %v1692 = vpack.c.b16 %v1332, %v1326
    %v1693 = vpack.c.b16 %v1333, %v1327
    %v1694 = vpack.c.b16 %v1340, %v1334
    %v1695 = vpack.c.b16 %v1341, %v1335
    %v1696 = vpack.c.b16 %v1342, %v1336
    %v1697 = vpack.c.b16 %v1343, %v1337
    %v1698 = vpack.c.b16 %v1344, %v1338
    %v1699 = vpack.c.b16 %v1345, %v1339
    %v1700 = vpack.c.b16 %v1352, %v1346
    %v1701 = vpack.c.b16 %v1353, %v1347
    %v1702 = vpack.c.b16 %v1354, %v1348
    %v1703 = vpack.c.b16 %v1355, %v1349
    %v1704 = vpack.c.b16 %v1356, %v1350
    %v1705 = vpack.c.b16 %v1357, %v1351
    %v1706 = vpack.c.b16 %v1364, %v1358
    %v1707 = vpack.c.b16 %v1365, %v1359
    %v1708 = vpack.c.b16 %v1366, %v1360
    %v1709 = vpack.c.b16 %v1367, %v1361
    %v1710 = vpack.c.b16 %v1368, %v1362
    %v1711 = vpack.c.b16 %v1369, %v1363
    %v1712 = vpack.c.b16 %v1376, %v1370
    %v1713 = vpack.c.b16 %v1377, %v1371
    %v1714 = vpack.c.b16 %v1378, %v1372
    %v1715 = vpack.c.b16 %v1379, %v1373
    %v1716 = vpack.c.b16 %v1380, %v1374
    %v1717 = vpack.c.b16 %v1381, %v1375
    %v1718 = vpack.c.b16 %v1388, %v1382
    %v1719 = vpack.c.b16 %v1389, %v1383
    %v1720 = vpack.c.b16 %v1390, %v1384
    %v1721 = vpack.c.b16 %v1391, %v1385
    %v1722 = vpack.c.b16 %v1392, %v1386
    %v1723 = vpack.c.b16 %v1393, %v1387
    %v1724 = vpack.c.b16 %v1400, %v1394
    %v1725 = vpack.c.b16 %v1401, %v1395
    %v1726 = vpack.c.b16 %v1402, %v1396
    %v1727 = vpack.c.b16 %v1403, %v1397
    %v1728 = vpack.c.b16 %v1404, %v1398
    %v1729 = vpack.c.b16 %v1405, %v1399
    %v1730 = vpack.c.b16 %v1412, %v1406
    %v1731 = vpack.c.b16 %v1413, %v1407
    %v1732 = vpack.c.b16 %v1414, %v1408
    %v1733 = vpack.c.b16 %v1415, %v1409
    %v1734 = vpack.c.b16 %v1416, %v1410
    %v1735 = vpack.c.b16 %v1417, %v1411
    %v1736 = vpack.c.b16 %v1424, %v1418
    %v1737 = vpack.c.b16 %v1425, %v1419
    %v1738 = vpack.c.b16 %v1426, %v1420
    %v1739 = vpack.c.b16 %v1427, %v1421
    %v1740 = vpack.c.b16 %v1428, %v1422
    %v1741 = vpack.c.b16 %v1429, %v1423
    %v1742 = vpack.c.b16 %v1436, %v1430
    %v1743 = vpack.c.b16 %v1437, %v1431
    %v1744 = vpack.c.b16 %v1438, %v1432
    %v1745 = vpack.c.b16 %v1439, %v1433
    %v1746 = vpack.c.b16 %v1440, %v1434
    %v1747 = vpack.c.b16 %v1441, %v1435
    %v1748 = vpack.c.b16 %v1448, %v1442
    %v1749 = vpack.c.b16 %v1449, %v1443
    %v1750 = vpack.c.b16 %v1450, %v1444
    %v1751 = vpack.c.b16 %v1451, %v1445
    %v1752 = vpack.c.b16 %v1452, %v1446
    %v1753 = vpack.c.b16 %v1453, %v1447
    %v1754 = vpack.c.b16 %v1460, %v1454
    %v1755 = vpack.c.b16 %v1461, %v1455
    %v1756 = vpack.c.b16 %v1462, %v1456
    %v1757 = vpack.c.b16 %v1463, %v1457
    %v1758 = vpack.c.b16 %v1464, %v1458
    %v1759 = vpack.c.b16 %v1465, %v1459
    %v1760 = vpack.c.b16 %v1472, %v1466
    %v1761 = vpack.c.b16 %v1473, %v1467
    %v1762 = vpack.c.b16 %v1474, %v1468
    %v1763 = vpack.c.b16 %v1475, %v1469
    %v1764 = vpack.c.b16 %v1476, %v1470
    %v1765 = vpack.c.b16 %v1477, %v1471
    %2054 = vmatprep.subr.bf16.mxu0 %v1479
    %2055 = vmatpush1.bf16.msra.mxu0 %v1478
    %2056 = vmatprep.subr.bf16.mxu0 %v1485
    %2057 = vmatpush1.bf16.msra.mxu0 %v1484
    %2058 = vmatprep.subr.bf16.mxu0 %v1491
    %2059 = vmatpush1.bf16.msra.mxu0 %v1490
    %2060 = vmatprep.subr.bf16.mxu0 %v1497
    %2061 = vmatpush1.bf16.msra.mxu0 %v1496
    %2062 = vmatprep.subr.bf16.mxu0 %v1503
    %2063 = vmatpush1.bf16.msra.mxu0 %v1502
    %2064 = vmatprep.subr.bf16.mxu0 %v1509
    %2065 = vmatpush1.bf16.msra.mxu0 %v1508
    %2066 = vmatprep.subr.bf16.mxu0 %v1515
    %2067 = vmatpush1.bf16.msra.mxu0 %v1514
    %2068 = vmatprep.subr.bf16.mxu0 %v1521
    %2069 = vmatpush1.bf16.msra.mxu0 %v1520
    %2070 = vmatprep.subr.bf16.mxu0 %v1527
    %2071 = vmatpush1.bf16.msra.mxu0 %v1526
    %2072 = vmatprep.subr.bf16.mxu0 %v1533
    %2073 = vmatpush1.bf16.msra.mxu0 %v1532
    %2074 = vmatprep.subr.bf16.mxu0 %v1539
    %2075 = vmatpush1.bf16.msra.mxu0 %v1538
    %2076 = vmatprep.subr.bf16.mxu0 %v1545
    %2077 = vmatpush1.bf16.msra.mxu0 %v1544
    %2078 = vmatprep.subr.bf16.mxu0 %v1551
    %2079 = vmatpush1.bf16.msra.mxu0 %v1550
    %2080 = vmatprep.subr.bf16.mxu0 %v1557
    %2081 = vmatpush1.bf16.msra.mxu0 %v1556
    %2082 = vmatprep.subr.bf16.mxu0 %v1563
    %2083 = vmatpush1.bf16.msra.mxu0 %v1562
    %2084 = vmatprep.subr.bf16.mxu0 %v1569
    %2085 = vmatpush1.bf16.msra.mxu0 %v1568
    %2086 = vmatprep.mubr.bf16.mxu0 %v290
    %2087 = vmatmul.mubr.bf16.gmra.mrb[0].mxu0 %v289
    %v2088 = vpop.f32.mrb[0].mxu0
    %v2089 = vadd.f32 %v587, %v2088
    %v2090 = vpop.f32.mrb[0].mxu0
    %v2091 = vadd.f32 %v591, %v2090
    %v2092 = vpop.f32.mrb[0].mxu0
    %v2093 = vpop.f32.mrb[0].mxu0
    %2094 = vdwg.mxu0
    %2095 = vmatprep.subr.bf16.mxu0 %v1575
    %2096 = vmatpush1.bf16.msra.mxu0 %v1574
    %2097 = vmatprep.subr.bf16.mxu0 %v1581
    %2098 = vmatpush1.bf16.msra.mxu0 %v1580
    %2099 = vmatprep.subr.bf16.mxu0 %v1587
    %2100 = vmatpush1.bf16.msra.mxu0 %v1586
    %2101 = vmatprep.subr.bf16.mxu0 %v1593
    %2102 = vmatpush1.bf16.msra.mxu0 %v1592
    %2103 = vmatprep.subr.bf16.mxu0 %v1599
    %2104 = vmatpush1.bf16.msra.mxu0 %v1598
    %2105 = vmatprep.subr.bf16.mxu0 %v1605
    %2106 = vmatpush1.bf16.msra.mxu0 %v1604
    %2107 = vmatprep.subr.bf16.mxu0 %v1611
    %2108 = vmatpush1.bf16.msra.mxu0 %v1610
    %2109 = vmatprep.subr.bf16.mxu0 %v1617
    %2110 = vmatpush1.bf16.msra.mxu0 %v1616
    %2111 = vmatprep.subr.bf16.mxu0 %v1623
    %2112 = vmatpush1.bf16.msra.mxu0 %v1622
    %2113 = vmatprep.subr.bf16.mxu0 %v1629
    %2114 = vmatpush1.bf16.msra.mxu0 %v1628
    %2115 = vmatprep.subr.bf16.mxu0 %v1635
    %2116 = vmatpush1.bf16.msra.mxu0 %v1634
    %2117 = vmatprep.subr.bf16.mxu0 %v1641
    %2118 = vmatpush1.bf16.msra.mxu0 %v1640
    %2119 = vmatprep.subr.bf16.mxu0 %v1647
    %2120 = vmatpush1.bf16.msra.mxu0 %v1646
    %2121 = vmatprep.subr.bf16.mxu0 %v1653
    %2122 = vmatpush1.bf16.msra.mxu0 %v1652
    %2123 = vmatprep.subr.bf16.mxu0 %v1659
    %2124 = vmatpush1.bf16.msra.mxu0 %v1658
    %2125 = vmatprep.subr.bf16.mxu0 %v1665
    %2126 = vmatpush1.bf16.msra.mxu0 %v1664
    %2127 = vmatprep.mubr.bf16.mxu0 %v292
    %2128 = vmatmul.mubr.bf16.gmra.mrb[0].mxu0 %v291
    %v2129 = vpop.f32.mrb[0].mxu0
    %v2130 = vadd.f32 %v2089, %v2129
    %v2131 = vpop.f32.mrb[0].mxu0
    %v2132 = vadd.f32 %v2091, %v2131
    %v2133 = vpop.f32.mrb[0].mxu0
    %v2134 = vpop.f32.mrb[0].mxu0
    %2135 = vdwg.mxu0
    %2136 = vmatprep.subr.bf16.mxu0 %v1671
    %2137 = vmatpush1.bf16.msra.mxu0 %v1670
    %2138 = vmatprep.subr.bf16.mxu0 %v1677
    %2139 = vmatpush1.bf16.msra.mxu0 %v1676
    %2140 = vmatprep.subr.bf16.mxu0 %v1683
    %2141 = vmatpush1.bf16.msra.mxu0 %v1682
    %2142 = vmatprep.subr.bf16.mxu0 %v1689
    %2143 = vmatpush1.bf16.msra.mxu0 %v1688
    %2144 = vmatprep.subr.bf16.mxu0 %v1695
    %2145 = vmatpush1.bf16.msra.mxu0 %v1694
    %2146 = vmatprep.subr.bf16.mxu0 %v1701
    %2147 = vmatpush1.bf16.msra.mxu0 %v1700
    %2148 = vmatprep.subr.bf16.mxu0 %v1707
    %2149 = vmatpush1.bf16.msra.mxu0 %v1706
    %2150 = vmatprep.subr.bf16.mxu0 %v1713
    %2151 = vmatpush1.bf16.msra.mxu0 %v1712
    %2152 = vmatprep.subr.bf16.mxu0 %v1719
    %2153 = vmatpush1.bf16.msra.mxu0 %v1718
    %2154 = vmatprep.subr.bf16.mxu0 %v1725
    %2155 = vmatpush1.bf16.msra.mxu0 %v1724
    %2156 = vmatprep.subr.bf16.mxu0 %v1731
    %2157 = vmatpush1.bf16.msra.mxu0 %v1730
    %2158 = vmatprep.subr.bf16.mxu0 %v1737
    %2159 = vmatpush1.bf16.msra.mxu0 %v1736
    %2160 = vmatprep.subr.bf16.mxu0 %v1743
    %2161 = vmatpush1.bf16.msra.mxu0 %v1742
    %2162 = vmatprep.subr.bf16.mxu0 %v1749
    %2163 = vmatpush1.bf16.msra.mxu0 %v1748
    %2164 = vmatprep.subr.bf16.mxu0 %v1755
    %2165 = vmatpush1.bf16.msra.mxu0 %v1754
    %2166 = vmatprep.subr.bf16.mxu0 %v1761
    %2167 = vmatpush1.bf16.msra.mxu0 %v1760
    %2168 = vmatprep.mubr.bf16.mxu0 %v294
    %2169 = vmatmul.mubr.bf16.gmra.mrb[0].mxu0 %v293
    %v2170 = vpop.f32.mrb[0].mxu0
    %v2171 = vadd.f32 %v2130, %v2170
    %v2172 = vpop.f32.mrb[0].mxu0
    %v2173 = vadd.f32 %v2132, %v2172
    %v2174 = vpop.f32.mrb[0].mxu0
    %v2175 = vpop.f32.mrb[0].mxu0
    %2176 = vdwg.mxu0
    %2177 = vmatprep.subr.bf16.mxu0 %v1481
    %2178 = vmatpush1.bf16.msra.mxu0 %v1480
    %2179 = vmatprep.subr.bf16.mxu0 %v1487
    %2180 = vmatpush1.bf16.msra.mxu0 %v1486
    %2181 = vmatprep.subr.bf16.mxu0 %v1493
    %2182 = vmatpush1.bf16.msra.mxu0 %v1492
    %2183 = vmatprep.subr.bf16.mxu0 %v1499
    %2184 = vmatpush1.bf16.msra.mxu0 %v1498
    %2185 = vmatprep.subr.bf16.mxu0 %v1505
    %2186 = vmatpush1.bf16.msra.mxu0 %v1504
    %2187 = vmatprep.subr.bf16.mxu0 %v1511
    %2188 = vmatpush1.bf16.msra.mxu0 %v1510
    %2189 = vmatprep.subr.bf16.mxu0 %v1517
    %2190 = vmatpush1.bf16.msra.mxu0 %v1516
    %2191 = vmatprep.subr.bf16.mxu0 %v1523
    %2192 = vmatpush1.bf16.msra.mxu0 %v1522
    %2193 = vmatprep.subr.bf16.mxu0 %v1529
    %2194 = vmatpush1.bf16.msra.mxu0 %v1528
    %2195 = vmatprep.subr.bf16.mxu0 %v1535
    %2196 = vmatpush1.bf16.msra.mxu0 %v1534
    %2197 = vmatprep.subr.bf16.mxu0 %v1541
    %2198 = vmatpush1.bf16.msra.mxu0 %v1540
    %2199 = vmatprep.subr.bf16.mxu0 %v1547
    %2200 = vmatpush1.bf16.msra.mxu0 %v1546
    %2201 = vmatprep.subr.bf16.mxu0 %v1553
    %2202 = vmatpush1.bf16.msra.mxu0 %v1552
    %2203 = vmatprep.subr.bf16.mxu0 %v1559
    %2204 = vmatpush1.bf16.msra.mxu0 %v1558
    %2205 = vmatprep.subr.bf16.mxu0 %v1565
    %2206 = vmatpush1.bf16.msra.mxu0 %v1564
    %2207 = vmatprep.subr.bf16.mxu0 %v1571
    %2208 = vmatpush1.bf16.msra.mxu0 %v1570
    %2209 = vmatprep.mubr.bf16.mxu0 %v290
    %2210 = vmatmul.mubr.bf16.gmra.mrb[0].mxu0 %v289
    %v2211 = vpop.f32.mrb[0].mxu0
    %v2212 = vadd.f32 %v595, %v2211
    %v2213 = vpop.f32.mrb[0].mxu0
    %v2214 = vadd.f32 %v599, %v2213
    %v2215 = vpop.f32.mrb[0].mxu0
    %v2216 = vpop.f32.mrb[0].mxu0
    %2217 = vdwg.mxu0
    %2218 = vmatprep.subr.bf16.mxu0 %v1577
    %2219 = vmatpush1.bf16.msra.mxu0 %v1576
    %2220 = vmatprep.subr.bf16.mxu0 %v1583
    %2221 = vmatpush1.bf16.msra.mxu0 %v1582
    %2222 = vmatprep.subr.bf16.mxu0 %v1589
    %2223 = vmatpush1.bf16.msra.mxu0 %v1588
    %2224 = vmatprep.subr.bf16.mxu0 %v1595
    %2225 = vmatpush1.bf16.msra.mxu0 %v1594
    %2226 = vmatprep.subr.bf16.mxu0 %v1601
    %2227 = vmatpush1.bf16.msra.mxu0 %v1600
    %2228 = vmatprep.subr.bf16.mxu0 %v1607
    %2229 = vmatpush1.bf16.msra.mxu0 %v1606
    %2230 = vmatprep.subr.bf16.mxu0 %v1613
    %2231 = vmatpush1.bf16.msra.mxu0 %v1612
    %2232 = vmatprep.subr.bf16.mxu0 %v1619
    %2233 = vmatpush1.bf16.msra.mxu0 %v1618
    %2234 = vmatprep.subr.bf16.mxu0 %v1625
    %2235 = vmatpush1.bf16.msra.mxu0 %v1624
    %2236 = vmatprep.subr.bf16.mxu0 %v1631
    %2237 = vmatpush1.bf16.msra.mxu0 %v1630
    %2238 = vmatprep.subr.bf16.mxu0 %v1637
    %2239 = vmatpush1.bf16.msra.mxu0 %v1636
    %2240 = vmatprep.subr.bf16.mxu0 %v1643
    %2241 = vmatpush1.bf16.msra.mxu0 %v1642
    %2242 = vmatprep.subr.bf16.mxu0 %v1649
    %2243 = vmatpush1.bf16.msra.mxu0 %v1648
    %2244 = vmatprep.subr.bf16.mxu0 %v1655
    %2245 = vmatpush1.bf16.msra.mxu0 %v1654
    %2246 = vmatprep.subr.bf16.mxu0 %v1661
    %2247 = vmatpush1.bf16.msra.mxu0 %v1660
    %2248 = vmatprep.subr.bf16.mxu0 %v1667
    %2249 = vmatpush1.bf16.msra.mxu0 %v1666
    %2250 = vmatprep.mubr.bf16.mxu0 %v292
    %2251 = vmatmul.mubr.bf16.gmra.mrb[0].mxu0 %v291
    %v2252 = vpop.f32.mrb[0].mxu0
    %v2253 = vadd.f32 %v2212, %v2252
    %v2254 = vpop.f32.mrb[0].mxu0
    %v2255 = vadd.f32 %v2214, %v2254
    %v2256 = vpop.f32.mrb[0].mxu0
    %v2257 = vpop.f32.mrb[0].mxu0
    %2258 = vdwg.mxu0
    %2259 = vmatprep.subr.bf16.mxu0 %v1673
    %2260 = vmatpush1.bf16.msra.mxu0 %v1672
    %2261 = vmatprep.subr.bf16.mxu0 %v1679
    %2262 = vmatpush1.bf16.msra.mxu0 %v1678
    %2263 = vmatprep.subr.bf16.mxu0 %v1685
    %2264 = vmatpush1.bf16.msra.mxu0 %v1684
    %2265 = vmatprep.subr.bf16.mxu0 %v1691
    %2266 = vmatpush1.bf16.msra.mxu0 %v1690
    %2267 = vmatprep.subr.bf16.mxu0 %v1697
    %2268 = vmatpush1.bf16.msra.mxu0 %v1696
    %2269 = vmatprep.subr.bf16.mxu0 %v1703
    %2270 = vmatpush1.bf16.msra.mxu0 %v1702
    %2271 = vmatprep.subr.bf16.mxu0 %v1709
    %2272 = vmatpush1.bf16.msra.mxu0 %v1708
    %2273 = vmatprep.subr.bf16.mxu0 %v1715
    %2274 = vmatpush1.bf16.msra.mxu0 %v1714
    %2275 = vmatprep.subr.bf16.mxu0 %v1721
    %2276 = vmatpush1.bf16.msra.mxu0 %v1720
    %2277 = vmatprep.subr.bf16.mxu0 %v1727
    %2278 = vmatpush1.bf16.msra.mxu0 %v1726
    %2279 = vmatprep.subr.bf16.mxu0 %v1733
    %2280 = vmatpush1.bf16.msra.mxu0 %v1732
    %2281 = vmatprep.subr.bf16.mxu0 %v1739
    %2282 = vmatpush1.bf16.msra.mxu0 %v1738
    %2283 = vmatprep.subr.bf16.mxu0 %v1745
    %2284 = vmatpush1.bf16.msra.mxu0 %v1744
    %2285 = vmatprep.subr.bf16.mxu0 %v1751
    %2286 = vmatpush1.bf16.msra.mxu0 %v1750
    %2287 = vmatprep.subr.bf16.mxu0 %v1757
    %2288 = vmatpush1.bf16.msra.mxu0 %v1756
    %2289 = vmatprep.subr.bf16.mxu0 %v1763
    %2290 = vmatpush1.bf16.msra.mxu0 %v1762
    %2291 = vmatprep.mubr.bf16.mxu0 %v294
    %2292 = vmatmul.mubr.bf16.gmra.mrb[0].mxu0 %v293
    %v2293 = vpop.f32.mrb[0].mxu0
    %v2294 = vadd.f32 %v2253, %v2293
    %v2295 = vpop.f32.mrb[0].mxu0
    %v2296 = vadd.f32 %v2255, %v2295
    %v2297 = vpop.f32.mrb[0].mxu0
    %v2298 = vpop.f32.mrb[0].mxu0
    %2299 = vdwg.mxu0
    %2300 = vmatprep.subr.bf16.mxu0 %v1483
    %2301 = vmatpush1.bf16.msra.mxu0 %v1482
    %2302 = vmatprep.subr.bf16.mxu0 %v1489
    %2303 = vmatpush1.bf16.msra.mxu0 %v1488
    %2304 = vmatprep.subr.bf16.mxu0 %v1495
    %2305 = vmatpush1.bf16.msra.mxu0 %v1494
    %2306 = vmatprep.subr.bf16.mxu0 %v1501
    %2307 = vmatpush1.bf16.msra.mxu0 %v1500
    %2308 = vmatprep.subr.bf16.mxu0 %v1507
    %2309 = vmatpush1.bf16.msra.mxu0 %v1506
    %2310 = vmatprep.subr.bf16.mxu0 %v1513
    %2311 = vmatpush1.bf16.msra.mxu0 %v1512
    %2312 = vmatprep.subr.bf16.mxu0 %v1519
    %2313 = vmatpush1.bf16.msra.mxu0 %v1518
    %2314 = vmatprep.subr.bf16.mxu0 %v1525
    %2315 = vmatpush1.bf16.msra.mxu0 %v1524
    %2316 = vmatprep.subr.bf16.mxu0 %v1531
    %2317 = vmatpush1.bf16.msra.mxu0 %v1530
    %2318 = vmatprep.subr.bf16.mxu0 %v1537
    %2319 = vmatpush1.bf16.msra.mxu0 %v1536
    %2320 = vmatprep.subr.bf16.mxu0 %v1543
    %2321 = vmatpush1.bf16.msra.mxu0 %v1542
    %2322 = vmatprep.subr.bf16.mxu0 %v1549
    %2323 = vmatpush1.bf16.msra.mxu0 %v1548
    %2324 = vmatprep.subr.bf16.mxu0 %v1555
    %2325 = vmatpush1.bf16.msra.mxu0 %v1554
    %2326 = vmatprep.subr.bf16.mxu0 %v1561
    %2327 = vmatpush1.bf16.msra.mxu0 %v1560
    %2328 = vmatprep.subr.bf16.mxu0 %v1567
    %2329 = vmatpush1.bf16.msra.mxu0 %v1566
    %2330 = vmatprep.subr.bf16.mxu0 %v1573
    %2331 = vmatpush1.bf16.msra.mxu0 %v1572
    %2332 = vmatprep.mubr.bf16.mxu0 %v290
    %2333 = vmatmul.mubr.bf16.gmra.mrb[0].mxu0 %v289
    %v2334 = vpop.f32.mrb[0].mxu0
    %v2335 = vadd.f32 %v603, %v2334
    %v2336 = vpop.f32.mrb[0].mxu0
    %v2337 = vadd.f32 %v607, %v2336
    %v2338 = vpop.f32.mrb[0].mxu0
    %v2339 = vpop.f32.mrb[0].mxu0
    %2340 = vdwg.mxu0
    %2341 = vmatprep.subr.bf16.mxu0 %v1579
    %2342 = vmatpush1.bf16.msra.mxu0 %v1578
    %2343 = vmatprep.subr.bf16.mxu0 %v1585
    %2344 = vmatpush1.bf16.msra.mxu0 %v1584
    %2345 = vmatprep.subr.bf16.mxu0 %v1591
    %2346 = vmatpush1.bf16.msra.mxu0 %v1590
    %2347 = vmatprep.subr.bf16.mxu0 %v1597
    %2348 = vmatpush1.bf16.msra.mxu0 %v1596
    %2349 = vmatprep.subr.bf16.mxu0 %v1603
    %2350 = vmatpush1.bf16.msra.mxu0 %v1602
    %2351 = vmatprep.subr.bf16.mxu0 %v1609
    %2352 = vmatpush1.bf16.msra.mxu0 %v1608
    %2353 = vmatprep.subr.bf16.mxu0 %v1615
    %2354 = vmatpush1.bf16.msra.mxu0 %v1614
    %2355 = vmatprep.subr.bf16.mxu0 %v1621
    %2356 = vmatpush1.bf16.msra.mxu0 %v1620
    %2357 = vmatprep.subr.bf16.mxu0 %v1627
    %2358 = vmatpush1.bf16.msra.mxu0 %v1626
    %2359 = vmatprep.subr.bf16.mxu0 %v1633
    %2360 = vmatpush1.bf16.msra.mxu0 %v1632
    %2361 = vmatprep.subr.bf16.mxu0 %v1639
    %2362 = vmatpush1.bf16.msra.mxu0 %v1638
    %2363 = vmatprep.subr.bf16.mxu0 %v1645
    %2364 = vmatpush1.bf16.msra.mxu0 %v1644
    %2365 = vmatprep.subr.bf16.mxu0 %v1651
    %2366 = vmatpush1.bf16.msra.mxu0 %v1650
    %2367 = vmatprep.subr.bf16.mxu0 %v1657
    %2368 = vmatpush1.bf16.msra.mxu0 %v1656
    %2369 = vmatprep.subr.bf16.mxu0 %v1663
    %2370 = vmatpush1.bf16.msra.mxu0 %v1662
    %2371 = vmatprep.subr.bf16.mxu0 %v1669
    %2372 = vmatpush1.bf16.msra.mxu0 %v1668
    %2373 = vmatprep.mubr.bf16.mxu0 %v292
    %2374 = vmatmul.mubr.bf16.gmra.mrb[0].mxu0 %v291
    %v2375 = vpop.f32.mrb[0].mxu0
    %v2376 = vadd.f32 %v2335, %v2375
    %v2377 = vpop.f32.mrb[0].mxu0
    %v2378 = vadd.f32 %v2337, %v2377
    %v2379 = vpop.f32.mrb[0].mxu0
    %v2380 = vpop.f32.mrb[0].mxu0
    %2381 = vdwg.mxu0
    %2382 = vmatprep.subr.bf16.mxu0 %v1675
    %2383 = vmatpush1.bf16.msra.mxu0 %v1674
    %2384 = vmatprep.subr.bf16.mxu0 %v1681
    %2385 = vmatpush1.bf16.msra.mxu0 %v1680
    %2386 = vmatprep.subr.bf16.mxu0 %v1687
    %2387 = vmatpush1.bf16.msra.mxu0 %v1686
    %2388 = vmatprep.subr.bf16.mxu0 %v1693
    %2389 = vmatpush1.bf16.msra.mxu0 %v1692
    %2390 = vmatprep.subr.bf16.mxu0 %v1699
    %2391 = vmatpush1.bf16.msra.mxu0 %v1698
    %2392 = vmatprep.subr.bf16.mxu0 %v1705
    %2393 = vmatpush1.bf16.msra.mxu0 %v1704
    %2394 = vmatprep.subr.bf16.mxu0 %v1711
    %2395 = vmatpush1.bf16.msra.mxu0 %v1710
    %2396 = vmatprep.subr.bf16.mxu0 %v1717
    %2397 = vmatpush1.bf16.msra.mxu0 %v1716
    %2398 = vmatprep.subr.bf16.mxu0 %v1723
    %2399 = vmatpush1.bf16.msra.mxu0 %v1722
    %2400 = vmatprep.subr.bf16.mxu0 %v1729
    %2401 = vmatpush1.bf16.msra.mxu0 %v1728
    %2402 = vmatprep.subr.bf16.mxu0 %v1735
    %2403 = vmatpush1.bf16.msra.mxu0 %v1734
    %2404 = vmatprep.subr.bf16.mxu0 %v1741
    %2405 = vmatpush1.bf16.msra.mxu0 %v1740
    %2406 = vmatprep.subr.bf16.mxu0 %v1747
    %2407 = vmatpush1.bf16.msra.mxu0 %v1746
    %2408 = vmatprep.subr.bf16.mxu0 %v1753
    %2409 = vmatpush1.bf16.msra.mxu0 %v1752
    %2410 = vmatprep.subr.bf16.mxu0 %v1759
    %2411 = vmatpush1.bf16.msra.mxu0 %v1758
    %2412 = vmatprep.subr.bf16.mxu0 %v1765
    %2413 = vmatpush1.bf16.msra.mxu0 %v1764
    %2414 = vmatprep.mubr.bf16.mxu0 %v294
    %2415 = vmatmul.mubr.bf16.gmra.mrb[0].mxu0 %v293
    %v2416 = vpop.f32.mrb[0].mxu0
    %v2417 = vadd.f32 %v2376, %v2416
    %v2418 = vpop.f32.mrb[0].mxu0
    %v2419 = vadd.f32 %v2378, %v2418
    %v2420 = vpop.f32.mrb[0].mxu0
    %v2421 = vpop.f32.mrb[0].mxu0
    %2422 = vdwg.mxu0
    %v2423 = vmax.f32 %v2171, 0.0
    %v2424 = vmax.f32 %v2173, 0.0
    %v2425 = vmax.f32 %v2294, 0.0
    %v2426 = vmax.f32 %v2296, 0.0
    %v2427 = vmax.f32 %v2417, 0.0
    %v2428 = vmax.f32 %v2419, 0.0
    %v2430 = vlaneseq
    %v2431 = vshrl.u32 %v2430, 7
    %v2432 = vsub.s32 0, %v2431
    %v2433 = vrot.slane %v73, %v2432
    %v2434 = vlaneseq
    %v2435 = vshrl.u32 %v2434, 7
    %v2436 = vsub.s32 1, %v2435
    %v2437 = vrot.slane %v73, %v2436
    %v2438 = vlaneseq
    %v2439 = vshrl.u32 %v2438, 7
    %v2440 = vsub.s32 2, %v2439
    %v2441 = vrot.slane %v73, %v2440
    %v2442 = vlaneseq
    %v2443 = vshrl.u32 %v2442, 7
    %v2444 = vsub.s32 3, %v2443
    %v2445 = vrot.slane %v73, %v2444
    %v2446 = vlaneseq
    %v2447 = vshrl.u32 %v2446, 7
    %v2448 = vsub.s32 4, %v2447
    %v2449 = vrot.slane %v73, %v2448
    %v2450 = vlaneseq
    %v2451 = vshrl.u32 %v2450, 7
    %v2452 = vsub.s32 5, %v2451
    %v2453 = vrot.slane %v73, %v2452
    %v2460 = vmul.f32 %v2423, %v2433
    %v2461 = vmul.f32 %v2424, %v2437
    %v2462 = vmul.f32 %v2425, %v2441
    %v2463 = vmul.f32 %v2426, %v2445
    %v2464 = vmul.f32 %v2427, %v2449
    %v2465 = vmul.f32 %v2428, %v2453
    %v2466 = vadd.f32 %v2460, %v2461
    %v2467 = vadd.f32 %v2466, %v2462
    %v2468 = vadd.f32 %v2467, %v2463
    %v2469 = vadd.f32 %v2468, %v2464
    %v2470 = vadd.f32 %v2469, %v2465
    %2471 = vadd.xlane.f32.xlu0 %v2470
    %v2472 = vpop.xlane.xlu0 %2471
    %v2473 = vlaneseq
    %v2474 = vshrl.u32 %v2473, 7
    %v2475 = vsub.s32 0, %v2474
    %v2476 = vrot.slane %v74, %v2475
    %v2477 = vadd.f32 %v2472, %v2476
    %vm2478 = vcmask 7168
    %2479 = vst.msk [vmem:[%s4] sm:$0xff] %vm2478, %v2477
    // Predicated region
    $region34: #{tpu_custom_call.1} parent=1 // pred_check
      _
    $region35: #{tpu_custom_call.1} parent=1 // pred_check_branch
      %2481 = sbr.rel (0) target = $region37
    $region36: #{tpu_custom_call.1} parent=1 // pred_region
      _
    $region37: #{tpu_custom_call.1} parent=1 // pred_fallthru
      _
    // Predicated region
    $region38: #{tpu_custom_call.1} parent=1 // pred_check
      _
    $region39: #{tpu_custom_call.1} parent=1 // pred_check_branch
      %2483 = sbr.rel (0) target = $region41
    $region40: #{tpu_custom_call.1} parent=1 // pred_region
      _
    $region41: #{tpu_custom_call.1} parent=1 // pred_fallthru
      _
    %2484 = vsyncpa [#allocation3], 1
    %2485 = vsyncpa [#allocation5], 1
    %2486 = vsyncpa [#allocation8], 1

</llo_original>
